<compile_context>
chip_gen: v6e
topology: v6e:2x2x1
jax: 0.10.0
libtpu: 0.0.40
codegen_flags: <defaults>
</compile_context>

<pallas_src>
import functools

import jax
import jax.numpy as jnp
from jax.experimental import pallas as pl
from jax.experimental.pallas import tpu as pltpu


def _sca_kernel(x_ref, w1_ref, w2_ref, p_ref, out_ref, *, elem_dtype):
    """One grid step: TG (batch, g') group pairs, both shuffle halves p in {0, 1}.

    x_ref:   (2, TG, Cg, HW)  inputs; dim 0 is the shuffle half p = g // (G/2)
    w1_ref:  (Cg, hidden)     fc conv #1 weight, transposed (no bias)
    w2_ref:  (hidden, Ch)     fc conv #2 weight, transposed (no bias)
    p_ref:   (4, Ch)          rows = [cweight, cbias, sweight*gn_w, sbias + 2*sweight*gn_b]
    out_ref: (TG, Cg, 2*HW)   shuffled output: lane offset = p*HW + hw,
                              channels [0, Ch) = xn branch, [Ch, Cg) = xs branch
    """
    x = x_ref[...]                                                     # (2, TG, Cg, HW)
    _, TG, Cg, HW = x.shape
    Ch = Cg // 2
    inv_hw = 1.0 / HW
    eps = 1e-5

    # ---- per-(row, channel) statistics over HW (lane dim), f32 accumulation ----
    mean = jnp.sum(x, axis=-1, dtype=jnp.float32) * inv_hw             # (2, TG, Cg)
    ssq = jnp.sum(jnp.square(x.astype(jnp.float32)), axis=-1)          # square in f32
    mx = jnp.max(x, axis=-1).astype(jnp.float32)                       # (2, TG, Cg)
    var = jnp.maximum(ssq * inv_hw - mean * mean, 0.0)                 # clamp cancellation
    rstd = jax.lax.rsqrt(var + eps)                                    # (2, TG, Cg)

    # ---- shared MLP on avg- and max-pooled vectors, fused into one matmul pair ----
    pooled = jnp.concatenate(
        [mean.reshape(2 * TG, Cg), mx.reshape(2 * TG, Cg)], axis=0)    # (4*TG, Cg)
    h = jnp.maximum(
        jnp.dot(pooled, w1_ref[...], preferred_element_type=jnp.float32), 0.0)
    fco = jnp.dot(h, w2_ref[...], preferred_element_type=jnp.float32)  # (4*TG, Ch)
    avg_out = fco[: 2 * TG].reshape(2, TG, Ch)
    max_out = fco[2 * TG:].reshape(2, TG, Ch)

    prm = p_ref[...]                                                   # (4, Ch) f32
    cw, cb = prm[0:1, :], prm[1:2, :]
    a_sg, b_fold = prm[2:3, :], prm[3:4, :]                            # sw*gw, sb + 2*sw*gb

    mean0, mean1 = mean[..., :Ch], mean[..., Ch:]
    rstd0, rstd1 = rstd[..., :Ch], rstd[..., Ch:]
    mx0, mx1 = mx[..., :Ch], mx[..., Ch:]

    # channel-branch pre-sigmoid argument (constant over HW), (2, TG, Ch)
    r_lo = cw * (mean0 + mean1 + mx0 + mx1 + avg_out + max_out) + cb
    # spatial branch: GroupNorm + sweight/sbias folded to per-channel coefficients so
    #   sigmoid_arg = k0*x_0 + k1*x_1 + k2
    k0 = a_sg * rstd0
    k1 = a_sg * rstd1
    k2 = b_fold - k0 * mean0 - k1 * mean1

    # unified per-channel coefficients over all Cg output channels (stored negated so
    # exp(-arg) needs no extra per-element negation):
    #   out[c] = x[c] * sigmoid(P[c]*x_roll[c] + Q[c]*x[c] + R[c]),  x_roll[c] = x[c +- Ch]
    zeros = jnp.zeros_like(k0)
    p_neg = -jnp.concatenate([zeros, k0], axis=-1)                     # (2, TG, Cg)
    q_neg = -jnp.concatenate([zeros, k1], axis=-1)
    r_neg = -jnp.concatenate([r_lo, k2], axis=-1)

    pn = p_neg[..., None].astype(elem_dtype)
    qn = q_neg[..., None].astype(elem_dtype)
    rn = r_neg[..., None].astype(elem_dtype)

    xe = x.astype(elem_dtype)                                          # no-op when dtypes match
    x_roll = jnp.concatenate([xe[:, :, Ch:, :], xe[:, :, :Ch, :]], axis=2)

    e = jnp.exp(pn * x_roll + qn * xe + rn)                            # exp(-arg), EUP
    gate = pl.reciprocal(1.0 + e, approx=True)                         # sigmoid(arg), EUP recip
    y = (xe * gate).astype(out_ref.dtype)                              # (2, TG, Cg, HW)

    # lane-dense stores, one per shuffle half (p=0 -> lanes [0, HW), p=1 -> [HW, 2*HW))
    out_ref[:, :, :HW] = y[0]
    out_ref[:, :, HW:] = y[1]


def _vmem_capacity_bytes():
    """Physical VMEM of the attached TPU; conservative fallback if undetectable."""
    try:
        return int(pltpu.get_tpu_info().vmem_capacity_bytes)
    except Exception:
        return 64 * 1024 * 1024


def _elem_compute_dtype(x_dtype):
    """Per-element math dtype: keep bf16 on chips with a native-bf16 VPU (v6e/v7x)."""
    if jnp.dtype(x_dtype) != jnp.dtype(jnp.bfloat16):
        return jnp.float32
    try:
        kind = jax.devices()[0].device_kind.lower()
    except Exception:
        return jnp.float32
    return jnp.bfloat16 if ("v6" in kind or "v7" in kind) else jnp.float32


def _choose_tile(batch, gh, block_unit_bytes):
    """TG (group pairs per grid step) + VMEM limit, generation-aware.

    block_unit_bytes = bytes of the x block for TG == 1 (the out block is the same size).
    Real live VMEM is ~4x the block (double-buffered in+out) plus a few full-size f32
    temporaries, so the x-block target is kept well below the scoped limit.
    """
    vmem = _vmem_capacity_bytes()
    if vmem >= 96 * 1024 * 1024:              # v5e / v6e: 128 MiB VMEM
        target, vmem_limit = 4 * 1024 * 1024, 64 * 1024 * 1024
    else:                                     # v7x: 64 MiB VMEM (32 MiB scoped default)
        target, vmem_limit = 3 * 1024 * 1024 // 2, 32 * 1024 * 1024

    divisors = [d for d in range(1, gh + 1) if gh % d == 0]
    fitting = [d for d in divisors if d * block_unit_bytes <= target] or [1]
    # prefer an even total number of grid steps (v7x shares the "parallel" axes
    # across 2 TensorCores); otherwise take the largest fitting block.
    even = [d for d in fitting if (batch * (gh // d)) % 2 == 0]
    return max(even or fitting), vmem_limit


def sca_layer_forward(x, w1, w2, cweight, cbias, sweight, sbias, gn_weight, gn_bias,
                      *, groups):
    """x: (B, C, H, W); w1: (hidden, Cg[,1,1]); w2: (Ch, hidden[,1,1]);
    cweight/cbias/sweight/sbias/gn_weight/gn_bias: per-channel (Ch,).
    Returns (B, C, H, W), already channel_shuffle(groups=2)'d like the PyTorch module."""
    B, C, H, W = x.shape
    G = groups
    assert C % G == 0 and G % 2 == 0
    Cg = C // G
    assert Cg % 2 == 0
    Ch = Cg // 2
    HW = H * W
    Gh = G // 2
    hidden = w1.shape[0]

    # Free reshape: dim 1 is the shuffle half p = g // (G/2) of each group row.
    x5 = x.reshape(B, 2, Gh, Cg, HW)

    w1_t = jnp.transpose(w1.reshape(hidden, Cg)).astype(jnp.float32)    # (Cg, hidden)
    w2_t = jnp.transpose(w2.reshape(Ch, hidden)).astype(jnp.float32)    # (hidden, Ch)

    cw = cweight.reshape(Ch).astype(jnp.float32)
    cb = cbias.reshape(Ch).astype(jnp.float32)
    sw = sweight.reshape(Ch).astype(jnp.float32)
    sb = sbias.reshape(Ch).astype(jnp.float32)
    gw = gn_weight.reshape(Ch).astype(jnp.float32)
    gb = gn_bias.reshape(Ch).astype(jnp.float32)
    # Fold the sweight/sbias + GroupNorm affine host-side: the kernel only needs
    # cweight, cbias, sweight*gn_w and sbias + 2*sweight*gn_b.
    params = jnp.stack([cw, cb, sw * gw, sb + 2.0 * sw * gb], axis=0)   # (4, Ch)

    tg, vmem_limit = _choose_tile(B, Gh, 2 * Cg * HW * x.dtype.itemsize)
    elem_dtype = _elem_compute_dtype(x.dtype)

    out5 = pl.pallas_call(
        functools.partial(_sca_kernel, elem_dtype=elem_dtype),
        out_shape=jax.ShapeDtypeStruct((B, Gh, Cg, 2 * HW), x.dtype),
        grid_spec=pltpu.PrefetchScalarGridSpec(
            num_scalar_prefetch=0,
            grid=(B, Gh // tg),
            in_specs=[
                pl.BlockSpec((None, 2, tg, Cg, HW), lambda b, j: (b, 0, j, 0, 0)),
                pl.BlockSpec((Cg, hidden), lambda b, j: (0, 0)),
                pl.BlockSpec((hidden, Ch), lambda b, j: (0, 0)),
                pl.BlockSpec((4, Ch), lambda b, j: (0, 0)),
            ],
            out_specs=pl.BlockSpec((None, tg, Cg, 2 * HW), lambda b, j: (b, j, 0, 0)),
        ),
        compiler_params=pltpu.CompilerParams(
            dimension_semantics=("parallel", "parallel"),
            vmem_limit_bytes=vmem_limit,
        ),
    )(x5, w1_t, w2_t, params)

    # channel_shuffle(cat([xn, xs], 1).reshape(b, -1, h, w), 2) is already folded into the
    # (B, G/2, Cg, 2*HW) output layout; this reshape is a free metadata change.
    return out5.reshape(B, C, H, W)


def _reference(x, w1, w2, cweight, cbias, sweight, sbias, gn_w, gn_b, groups, eps=1e-5):
    """Pure-JAX mirror of sca_layer.forward."""
    B, C, H, W = x.shape
    G = groups
    Cg = C // G
    Ch = Cg // 2
    xg = x.reshape(B * G, Cg, H, W)
    x0, x1 = xg[:, :Ch], xg[:, Ch:]

    def avg_pool(t):
        return jnp.mean(t, axis=(2, 3), keepdims=True)

    def max_pool(t):
        return jnp.max(t, axis=(2, 3), keepdims=True)

    def fc(v):  # v: (N, Cg, 1, 1), 1x1 convs with bias=False
        vv = v[:, :, 0, 0]
        h = jnp.maximum(vv @ w1.T, 0.0)
        return (h @ w2.T)[:, :, None, None]

    avg_out = fc(avg_pool(xg))
    max_out = fc(max_pool(xg))

    xn = (avg_pool(x0) + max_pool(x0) + max_pool(x1) + avg_pool(x1) + avg_out + max_out)
    xn = cweight.reshape(1, Ch, 1, 1) * xn + cbias.reshape(1, Ch, 1, 1)
    xn = x0 * jax.nn.sigmoid(xn)

    def gn(t):  # GroupNorm(num_groups=Ch, num_channels=Ch): per-channel over H, W
        mean = jnp.mean(t, axis=(2, 3), keepdims=True)
        var = jnp.mean((t - mean) ** 2, axis=(2, 3), keepdims=True)
        tn = (t - mean) / jnp.sqrt(var + eps)
        return tn * gn_w.reshape(1, Ch, 1, 1) + gn_b.reshape(1, Ch, 1, 1)

    xs = gn(x1) + gn(x0)
    xs = sweight.reshape(1, Ch, 1, 1) * xs + sbias.reshape(1, Ch, 1, 1)
    xs = x1 * jax.nn.sigmoid(xs)

    out = jnp.concatenate([xn, xs], axis=1).reshape(B, C, H, W)
    out = out.reshape(B, 2, C // 2, H, W).transpose(0, 2, 1, 3, 4).reshape(B, C, H, W)
    return out


if __name__ == "__main__":
    # Shapes implied by the forward: input channels C = 4 * channel (constructor arg),
    # groups >= 4. Small, consistent sizes.
    B, C, H, W = 2, 64, 16, 16
    groups = 8
    channel = C // 4                 # constructor `channel` arg consistent with the forward
    Cg = C // groups                 # == channel // (groups // 4)
    Ch = Cg // 2                     # == channel // (groups // 2)
    hidden = channel * 4

    key = jax.random.PRNGKey(0)
    kx, k1, k2, kp = jax.random.split(key, 4)

    x = jax.random.normal(kx, (B, C, H, W), dtype=jnp.float32)
    # fc 1x1 conv weights (bias=False), shapes (out, in)
    w1 = jax.random.normal(k1, (hidden, Cg), dtype=jnp.float32) * (1.0 / jnp.sqrt(Cg))
    w2 = jax.random.normal(k2, (Ch, hidden), dtype=jnp.float32) * (1.0 / jnp.sqrt(hidden))
    # Learnable per-channel params. (torch inits are zeros/ones; random values are used
    # here so every branch of the forward actually affects the checked output.)
    pk = jax.random.normal(kp, (6, Ch), dtype=jnp.float32) * 0.5
    cweight, cbias, sweight, sbias, gn_w, gn_b = (pk[i] for i in range(6))

    out = sca_layer_forward(x, w1, w2, cweight, cbias, sweight, sbias, gn_w, gn_b,
                            groups=groups)
    out = jax.block_until_ready(out)

    ref = _reference(x, w1, w2, cweight, cbias, sweight, sbias, gn_w, gn_b, groups)
    assert out.shape == (B, C, H, W)
    # Tolerance is slightly looser than before because the gate uses the EUP
    # approximate reciprocal (pl.reciprocal(approx=True)); semantic errors would be O(1).
    err = float(jnp.max(jnp.abs(out - ref)))
    assert jnp.allclose(out, ref, atol=5e-3, rtol=5e-3), err

    print("KERNEL_OK")
</pallas_src>

<mosaic_0001>
module attributes {stable_mosaic.version = 11 : i64} {
  func.func @_sca_kernel(%arg0: i32, %arg1: i32, %arg2: memref<1x2x4x8x256xf32, #tpu.memory_space<vmem>>, %arg3: memref<8x64xf32, #tpu.memory_space<vmem>>, %arg4: memref<64x4xf32, #tpu.memory_space<vmem>>, %arg5: memref<4x4xf32, #tpu.memory_space<vmem>>, %arg6: memref<1x4x8x512xf32, #tpu.memory_space<vmem>>) attributes {dimension_semantics = [#tpu.dimension_semantics<parallel>, #tpu.dimension_semantics<parallel>], iteration_bounds = array<i64: 2, 1>, scalar_prefetch = 0 : i64, scratch_operands = 0 : i64, tpu.core_type = #tpu.core_type<tc>, window_params = [{transform_indices = @transform_0, window_bounds = array<i64: 1, 2, 4, 8, 256>}, {pipeline_mode = #tpu.pipeline_mode<synchronous>, transform_indices = @transform_1, window_bounds = array<i64: 8, 64>}, {pipeline_mode = #tpu.pipeline_mode<synchronous>, transform_indices = @transform_2, window_bounds = array<i64: 64, 4>}, {pipeline_mode = #tpu.pipeline_mode<synchronous>, transform_indices = @transform_3, window_bounds = array<i64: 4, 4>}, {transform_indices = @transform_4, window_bounds = array<i64: 1, 4, 8, 512>}]} {
    %c0 = arith.constant 0 : index
    %c0_0 = arith.constant 0 : index
    %c0_1 = arith.constant 0 : index
    %c0_2 = arith.constant 0 : index
    %c0_3 = arith.constant 0 : index
    %0 = vector.load %arg2[%c0, %c0_0, %c0_1, %c0_2, %c0_3] : memref<1x2x4x8x256xf32, #tpu.memory_space<vmem>>, vector<1x2x4x8x256xf32>
    %1 = vector.shape_cast %0 : vector<1x2x4x8x256xf32> to vector<2x4x8x256xf32>
    %cst = arith.constant dense<0.000000e+00> : vector<2x4x8xf32>
    %2 = vector.multi_reduction <add>, %1, %cst [3] : vector<2x4x8x256xf32> to vector<2x4x8xf32>
    %cst_4 = arith.constant 3.906250e-03 : f32
    %3 = vector.broadcast %cst_4 : f32 to vector<2x4x8xf32>
    %4 = arith.mulf %2, %3 : vector<2x4x8xf32>
    %5 = arith.mulf %1, %1 : vector<2x4x8x256xf32>
    %cst_5 = arith.constant dense<0.000000e+00> : vector<2x4x8xf32>
    %6 = vector.multi_reduction <add>, %5, %cst_5 [3] : vector<2x4x8x256xf32> to vector<2x4x8xf32>
    %cst_6 = arith.constant dense<0xFF800000> : vector<2x4x8xf32>
    %7 = vector.multi_reduction <maximumf>, %1, %cst_6 [3] : vector<2x4x8x256xf32> to vector<2x4x8xf32>
    %cst_7 = arith.constant 3.906250e-03 : f32
    %8 = vector.broadcast %cst_7 : f32 to vector<2x4x8xf32>
    %9 = arith.mulf %6, %8 : vector<2x4x8xf32>
    %10 = arith.mulf %4, %4 : vector<2x4x8xf32>
    %11 = arith.subf %9, %10 : vector<2x4x8xf32>
    %cst_8 = arith.constant 0.000000e+00 : f32
    %12 = vector.broadcast %cst_8 : f32 to vector<2x4x8xf32>
    %13 = arith.maximumf %11, %12 : vector<2x4x8xf32>
    %cst_9 = arith.constant 9.99999974E-6 : f32
    %14 = vector.broadcast %cst_9 : f32 to vector<2x4x8xf32>
    %15 = arith.addf %13, %14 : vector<2x4x8xf32>
    %16 = math.rsqrt %15 : vector<2x4x8xf32>
    %17 = vector.shape_cast %4 : vector<2x4x8xf32> to vector<8x8xf32>
    %18 = vector.shape_cast %7 : vector<2x4x8xf32> to vector<8x8xf32>
    %19 = tpu.concatenate %17, %18 in 0 : vector<8x8xf32>, vector<8x8xf32> -> vector<16x8xf32>
    %c0_10 = arith.constant 0 : index
    %c0_11 = arith.constant 0 : index
    %20 = vector.load %arg3[%c0_10, %c0_11] : memref<8x64xf32, #tpu.memory_space<vmem>>, vector<8x64xf32>
    %cst_12 = arith.constant dense<0.000000e+00> : vector<16x64xf32>
    %21 = tpu.matmul %19, %20, %cst_12 {dimension_numbers = #tpu.dot_dimension_numbers<[1], [0], [0], [1], [0, 0, 1, 1], [], []>} : vector<16x8xf32>, vector<8x64xf32>, vector<16x64xf32> -> vector<16x64xf32>
    %cst_13 = arith.constant 0.000000e+00 : f32
    %22 = vector.broadcast %cst_13 : f32 to vector<16x64xf32>
    %23 = arith.maximumf %21, %22 : vector<16x64xf32>
    %c0_14 = arith.constant 0 : index
    %c0_15 = arith.constant 0 : index
    %24 = vector.load %arg4[%c0_14, %c0_15] : memref<64x4xf32, #tpu.memory_space<vmem>>, vector<64x4xf32>
    %cst_16 = arith.constant dense<0.000000e+00> : vector<16x4xf32>
    %25 = tpu.matmul %23, %24, %cst_16 {dimension_numbers = #tpu.dot_dimension_numbers<[1], [0], [0], [1], [0, 0, 1, 1], [], []>} : vector<16x64xf32>, vector<64x4xf32>, vector<16x4xf32> -> vector<16x4xf32>
    %26 = vector.extract_strided_slice %25 {offsets = [0, 0], sizes = [8, 4], strides = [1, 1]} : vector<16x4xf32> to vector<8x4xf32>
    %27 = vector.shape_cast %26 : vector<8x4xf32> to vector<2x4x4xf32>
    %28 = vector.extract_strided_slice %25 {offsets = [8, 0], sizes = [8, 4], strides = [1, 1]} : vector<16x4xf32> to vector<8x4xf32>
    %29 = vector.shape_cast %28 : vector<8x4xf32> to vector<2x4x4xf32>
    %c0_17 = arith.constant 0 : index
    %c0_18 = arith.constant 0 : index
    %30 = vector.load %arg5[%c0_17, %c0_18] : memref<4x4xf32, #tpu.memory_space<vmem>>, vector<4x4xf32>
    %31 = vector.extract_strided_slice %30 {offsets = [0, 0], sizes = [1, 4], strides = [1, 1]} : vector<4x4xf32> to vector<1x4xf32>
    %32 = vector.extract_strided_slice %30 {offsets = [1, 0], sizes = [1, 4], strides = [1, 1]} : vector<4x4xf32> to vector<1x4xf32>
    %33 = vector.extract_strided_slice %30 {offsets = [2, 0], sizes = [1, 4], strides = [1, 1]} : vector<4x4xf32> to vector<1x4xf32>
    %34 = vector.extract_strided_slice %30 {offsets = [3, 0], sizes = [1, 4], strides = [1, 1]} : vector<4x4xf32> to vector<1x4xf32>
    %35 = vector.extract_strided_slice %4 {offsets = [0, 0, 0], sizes = [2, 4, 4], strides = [1, 1, 1]} : vector<2x4x8xf32> to vector<2x4x4xf32>
    %36 = vector.extract_strided_slice %4 {offsets = [0, 0, 4], sizes = [2, 4, 4], strides = [1, 1, 1]} : vector<2x4x8xf32> to vector<2x4x4xf32>
    %37 = vector.extract_strided_slice %16 {offsets = [0, 0, 0], sizes = [2, 4, 4], strides = [1, 1, 1]} : vector<2x4x8xf32> to vector<2x4x4xf32>
    %38 = vector.extract_strided_slice %16 {offsets = [0, 0, 4], sizes = [2, 4, 4], strides = [1, 1, 1]} : vector<2x4x8xf32> to vector<2x4x4xf32>
    %39 = vector.extract_strided_slice %7 {offsets = [0, 0, 0], sizes = [2, 4, 4], strides = [1, 1, 1]} : vector<2x4x8xf32> to vector<2x4x4xf32>
    %40 = vector.extract_strided_slice %7 {offsets = [0, 0, 4], sizes = [2, 4, 4], strides = [1, 1, 1]} : vector<2x4x8xf32> to vector<2x4x4xf32>
    %41 = arith.addf %35, %36 : vector<2x4x4xf32>
    %42 = arith.addf %41, %39 : vector<2x4x4xf32>
    %43 = arith.addf %42, %40 : vector<2x4x4xf32>
    %44 = arith.addf %43, %27 : vector<2x4x4xf32>
    %45 = arith.addf %44, %29 : vector<2x4x4xf32>
    %46 = vector.shape_cast %31 : vector<1x4xf32> to vector<1x1x4xf32>
    %47 = vector.broadcast %46 : vector<1x1x4xf32> to vector<2x4x4xf32>
    %48 = arith.mulf %47, %45 : vector<2x4x4xf32>
    %49 = vector.shape_cast %32 : vector<1x4xf32> to vector<1x1x4xf32>
    %50 = vector.broadcast %49 : vector<1x1x4xf32> to vector<2x4x4xf32>
    %51 = arith.addf %48, %50 : vector<2x4x4xf32>
    %52 = vector.shape_cast %33 : vector<1x4xf32> to vector<1x1x4xf32>
    %53 = vector.broadcast %52 : vector<1x1x4xf32> to vector<2x4x4xf32>
    %54 = arith.mulf %53, %37 : vector<2x4x4xf32>
    %55 = vector.shape_cast %33 : vector<1x4xf32> to vector<1x1x4xf32>
    %56 = vector.broadcast %55 : vector<1x1x4xf32> to vector<2x4x4xf32>
    %57 = arith.mulf %56, %38 : vector<2x4x4xf32>
    %58 = arith.mulf %54, %35 : vector<2x4x4xf32>
    %59 = vector.shape_cast %34 : vector<1x4xf32> to vector<1x1x4xf32>
    %60 = vector.broadcast %59 : vector<1x1x4xf32> to vector<2x4x4xf32>
    %61 = arith.subf %60, %58 : vector<2x4x4xf32>
    %62 = arith.mulf %57, %36 : vector<2x4x4xf32>
    %63 = arith.subf %61, %62 : vector<2x4x4xf32>
    %cst_19 = arith.constant 0.000000e+00 : f32
    %64 = vector.broadcast %cst_19 : f32 to vector<2x4x4xf32>
    %65 = tpu.concatenate %64, %54 in 2 : vector<2x4x4xf32>, vector<2x4x4xf32> -> vector<2x4x8xf32>
    %cst_20 = arith.constant 0.000000e+00 : f32
    %66 = vector.broadcast %cst_20 : f32 to vector<2x4x8xf32>
    %67 = arith.subf %66, %65 : vector<2x4x8xf32>
    %68 = tpu.concatenate %64, %57 in 2 : vector<2x4x4xf32>, vector<2x4x4xf32> -> vector<2x4x8xf32>
    %cst_21 = arith.constant 0.000000e+00 : f32
    %69 = vector.broadcast %cst_21 : f32 to vector<2x4x8xf32>
    %70 = arith.subf %69, %68 : vector<2x4x8xf32>
    %71 = tpu.concatenate %51, %63 in 2 : vector<2x4x4xf32>, vector<2x4x4xf32> -> vector<2x4x8xf32>
    %cst_22 = arith.constant 0.000000e+00 : f32
    %72 = vector.broadcast %cst_22 : f32 to vector<2x4x8xf32>
    %73 = arith.subf %72, %71 : vector<2x4x8xf32>
    %74 = vector.shape_cast %67 : vector<2x4x8xf32> to vector<2x4x8x1xf32>
    %75 = vector.shape_cast %70 : vector<2x4x8xf32> to vector<2x4x8x1xf32>
    %76 = vector.shape_cast %73 : vector<2x4x8xf32> to vector<2x4x8x1xf32>
    %77 = vector.extract_strided_slice %1 {offsets = [0, 0, 4, 0], sizes = [2, 4, 4, 256], strides = [1, 1, 1, 1]} : vector<2x4x8x256xf32> to vector<2x4x4x256xf32>
    %78 = vector.extract_strided_slice %1 {offsets = [0, 0, 0, 0], sizes = [2, 4, 4, 256], strides = [1, 1, 1, 1]} : vector<2x4x8x256xf32> to vector<2x4x4x256xf32>
    %79 = tpu.concatenate %77, %78 in 2 : vector<2x4x4x256xf32>, vector<2x4x4x256xf32> -> vector<2x4x8x256xf32>
    %80 = vector.broadcast %74 : vector<2x4x8x1xf32> to vector<2x4x8x256xf32>
    %81 = arith.mulf %80, %79 : vector<2x4x8x256xf32>
    %82 = vector.broadcast %75 : vector<2x4x8x1xf32> to vector<2x4x8x256xf32>
    %83 = arith.mulf %82, %1 : vector<2x4x8x256xf32>
    %84 = arith.addf %81, %83 : vector<2x4x8x256xf32>
    %85 = vector.broadcast %76 : vector<2x4x8x1xf32> to vector<2x4x8x256xf32>
    %86 = arith.addf %84, %85 : vector<2x4x8x256xf32>
    %87 = math.exp %86 : vector<2x4x8x256xf32>
    %cst_23 = arith.constant 1.000000e+00 : f32
    %88 = vector.broadcast %cst_23 : f32 to vector<2x4x8x256xf32>
    %89 = arith.addf %88, %87 : vector<2x4x8x256xf32>
    %90 = tpu.reciprocal %89 {approx = true} : vector<2x4x8x256xf32> -> vector<2x4x8x256xf32>
    %91 = arith.mulf %1, %90 : vector<2x4x8x256xf32>
    %92 = vector.extract_strided_slice %91 {offsets = [0, 0, 0, 0], sizes = [1, 4, 8, 256], strides = [1, 1, 1, 1]} : vector<2x4x8x256xf32> to vector<1x4x8x256xf32>
    %93 = vector.shape_cast %92 : vector<1x4x8x256xf32> to vector<4x8x256xf32>
    %c0_24 = arith.constant 0 : index
    %c0_25 = arith.constant 0 : index
    %c0_26 = arith.constant 0 : index
    %c0_27 = arith.constant 0 : index
    %94 = vector.load %arg6[%c0_24, %c0_25, %c0_26, %c0_27] : memref<1x4x8x512xf32, #tpu.memory_space<vmem>>, vector<1x4x8x256xf32>
    %95 = vector.shape_cast %94 : vector<1x4x8x256xf32> to vector<4x8x256xf32>
    %96 = vector.shape_cast %93 : vector<4x8x256xf32> to vector<1x4x8x256xf32>
    tpu.vector_store %arg6[%c0_24, %c0_25, %c0_26, %c0_27], %96 {strides = array<i32>} : memref<1x4x8x512xf32, #tpu.memory_space<vmem>>, vector<1x4x8x256xf32>,
    %97 = vector.extract_strided_slice %91 {offsets = [1, 0, 0, 0], sizes = [1, 4, 8, 256], strides = [1, 1, 1, 1]} : vector<2x4x8x256xf32> to vector<1x4x8x256xf32>
    %98 = vector.shape_cast %97 : vector<1x4x8x256xf32> to vector<4x8x256xf32>
    %c0_28 = arith.constant 0 : index
    %c0_29 = arith.constant 0 : index
    %c0_30 = arith.constant 0 : index
    %c256 = arith.constant 256 : index
    %99 = vector.load %arg6[%c0_28, %c0_29, %c0_30, %c256] : memref<1x4x8x512xf32, #tpu.memory_space<vmem>>, vector<1x4x8x256xf32>
    %100 = vector.shape_cast %99 : vector<1x4x8x256xf32> to vector<4x8x256xf32>
    %101 = vector.shape_cast %98 : vector<4x8x256xf32> to vector<1x4x8x256xf32>
    tpu.vector_store %arg6[%c0_28, %c0_29, %c0_30, %c256], %101 {strides = array<i32>} : memref<1x4x8x512xf32, #tpu.memory_space<vmem>>, vector<1x4x8x256xf32>,
    return
  }
  func.func @transform_0(%arg0: i32, %arg1: i32) -> (i32, i32, i32, i32, i32) {
    %c0_i32 = arith.constant 0 : i32
    %c0_i32_0 = arith.constant 0 : i32
    %c0_i32_1 = arith.constant 0 : i32
    %c0_i32_2 = arith.constant 0 : i32
    return %arg0, %c0_i32, %arg1, %c0_i32_0, %c0_i32_1 : i32, i32, i32, i32, i32
  }
  func.func @transform_1(%arg0: i32, %arg1: i32) -> (i32, i32) {
    %c0_i32 = arith.constant 0 : i32
    %c0_i32_0 = arith.constant 0 : i32
    %c0_i32_1 = arith.constant 0 : i32
    return %c0_i32, %c0_i32_0 : i32, i32
  }
  func.func @transform_2(%arg0: i32, %arg1: i32) -> (i32, i32) {
    %c0_i32 = arith.constant 0 : i32
    %c0_i32_0 = arith.constant 0 : i32
    %c0_i32_1 = arith.constant 0 : i32
    return %c0_i32, %c0_i32_0 : i32, i32
  }
  func.func @transform_3(%arg0: i32, %arg1: i32) -> (i32, i32) {
    %c0_i32 = arith.constant 0 : i32
    %c0_i32_0 = arith.constant 0 : i32
    %c0_i32_1 = arith.constant 0 : i32
    return %c0_i32, %c0_i32_0 : i32, i32
  }
  func.func @transform_4(%arg0: i32, %arg1: i32) -> (i32, i32, i32, i32) {
    %c0_i32 = arith.constant 0 : i32
    %c0_i32_0 = arith.constant 0 : i32
    %c0_i32_1 = arith.constant 0 : i32
    return %arg0, %arg1, %c0_i32, %c0_i32_0 : i32, i32, i32, i32
  }
}

</mosaic_0001>

<llo_original>
// kernel: tpu_custom_call.1
$region0: #{tpu_custom_call.1}
  #allocation0 [shape = 'u32[]', space=smem, size = 0x4, offset = 0x4, fixed_abs, tag = 'smem constant byte address 0x4 - core index']
  #allocation1 [shape = 'u32[144,128]{1,0:T(1,128)}', space=vmem, size = 0x12000, scoped, tag = 'internal scratch']
  %s0 = inlined_call_operand.hbm [shape: f32[2,2,4,8,256], index: 0, kind: input, shape index: {}]
  %s1 = inlined_call_operand.vmem [shape: f32[8,64], index: 1, kind: input, shape index: {}]
  %s2 = inlined_call_operand.vmem [shape: f32[64,4], index: 2, kind: input, shape index: {}]
  %s3 = inlined_call_operand.vmem [shape: f32[4,4], index: 3, kind: input, shape index: {}]
  %s4 = inlined_call_operand.hbm [shape: f32[2,4,8,512], index: 4, kind: output, shape index: {}]
  %s5 = sld [smem:[#allocation0]]
  $region53: #{tpu_custom_call.1} parent=0
    _
  %s7 = ssub.s32 1, %s5
  %s8 = scalar_select 0, %s7, %s5
  $region1: #{tpu_custom_call.1} parent=0
    #allocation2 [shape = 'u8[131072]{0}', space=vmem, size = 0x20000, scoped, tag = 'input window, operand 0']
    #allocation3 [shape = 's32[2]{0}', space=sflag, size = 0x8, scoped, tag = 'scoped memory for tpu_custom_call.1']
    #allocation4 [shape = 's32[2]{0}', space=sflag, size = 0x8, scoped, tag = 'scoped memory for tpu_custom_call.1']
    #allocation5 [shape = 'u8[131072]{0}', space=vmem, size = 0x20000, scoped, tag = 'output window, operand 0']
    %9 = vsyncpa [#allocation3], 0
    %s10 = scalar_lea.sflag [#allocation3], 1
    %11 = vsyncpa %s10, 0
    %12 = vsyncpa [#allocation4], 0
    %s13 = scalar_lea.sflag [#allocation4], 1
    %14 = vsyncpa %s13, 0
    loop: start=0, step=1, limit=4
    $region2: #{tpu_custom_call.1} parent=1 // loop_pre_header
      _
    $region3: #{tpu_custom_call.1} parent=1 // loop_header
      %s16 = sphi 0, %s20
      %p17 = scmp.ge.s32.totalorder %s16, 4
      %s23 = sphi 0, %s35
      %s24 = sphi 0, %s31
      %s25 = sphi 0, %s23
      %s26 = sphi 0, %s24
      %s27 = sphi 0, %s25
      %s28 = sphi 0, %s26
      %s40 = sphi 0, %s42
      %s43 = sphi 0, %s40
      %s44 = sphi 0, %s43
      %s60 = sphi 0, %s44
      %s64 = sphi 0, %s64
      %s66 = sphi 0, %s64
      %s67 = sphi 0, %s66
      %s81 = sphi 0, %s67
      %s85 = sphi 0, %s85
      %s87 = sphi 0, %s85
      %s88 = sphi 0, %s87
      %s102 = sphi 0, %s88
      %s106 = sphi 0, %s106
      %s108 = sphi 0, %s106
      %s109 = sphi 0, %s108
      %s123 = sphi 0, %s109
      %s131 = sphi 0, %s133
      %s134 = sphi 0, %s131
      %s135 = sphi 0, %s134
      %s151 = sphi 0, %s135
    $region4: #{tpu_custom_call.1} parent=1 // loop_header_branch
      %19 = sbr.rel (%p17) target = $region8
    $region5: #{tpu_custom_call.1} parent=1 // loop_body
      %s21 = ssub.s32 %s16, 1
      %s22 = ssub.s32 %s16, 2
      %s29 = sadd.s32 1, %s24
      %p30 = scmp.ge.s32.totalorder %s29, 1
      %s31 = scalar_select %p30, 0, %s29
      %s32 = sadd.s32 1, %s23
      %s33 = scalar_select %p30, %s32, %s23
      %p34 = scmp.ge.s32.totalorder %s33, 2
      %s35 = scalar_select %p34, 0, %s33
      %s36 = ssub.s32 %s23, %s35
      %s37 = ssub.s32 %s24, %s31
      %s38 = sor.u32 %s36, %s37
      %p39 = scmp.eq.s32.totalorder %s38, 0
      %s41 = sadd.s32 %s40, 1
      %s42 = scalar_select %p39, %s40, %s41
      %p45 = pneg %p39
      %p46 = scmp.eq.s32.totalorder %s16, 1
      %p47 = por %p45, %p46
      %p48 = scmp.ne.s32.totalorder %s40, %s43
      %p49 = scmp.eq.s32.totalorder %s16, 0
      %p50 = por %p48, %p49
      %p51 = scmp.ne.s32.totalorder %s40, %s43
      %p52 = scmp.eq.s32.totalorder %s21, 1
      %p53 = por %p51, %p52
      %p54 = scmp.ne.s32.totalorder %s43, %s44
      %p55 = scmp.eq.s32.totalorder %s21, 0
      %p56 = por %p54, %p55
      %p57 = scmp.ne.s32.totalorder %s43, %s44
      %p58 = scmp.eq.s32.totalorder %s22, 1
      %p59 = por %p57, %p58
      %p61 = scmp.ne.s32.totalorder %s44, %s60
      %p62 = scmp.eq.s32.totalorder %s22, 0
      %p63 = por %p61, %p62
      %s65 = sadd.s32 %s64, 1
      %p68 = scmp.eq.s32.totalorder %s16, 1
      %p69 = scmp.ne.s32.totalorder %s64, %s66
      %p70 = scmp.eq.s32.totalorder %s16, 0
      %p71 = por %p69, %p70
      %p72 = scmp.ne.s32.totalorder %s64, %s66
      %p73 = scmp.eq.s32.totalorder %s21, 1
      %p74 = por %p72, %p73
      %p75 = scmp.ne.s32.totalorder %s66, %s67
      %p76 = scmp.eq.s32.totalorder %s21, 0
      %p77 = por %p75, %p76
      %p78 = scmp.ne.s32.totalorder %s66, %s67
      %p79 = scmp.eq.s32.totalorder %s22, 1
      %p80 = por %p78, %p79
      %p82 = scmp.ne.s32.totalorder %s67, %s81
      %p83 = scmp.eq.s32.totalorder %s22, 0
      %p84 = por %p82, %p83
      %s86 = sadd.s32 %s85, 1
      %p89 = scmp.eq.s32.totalorder %s16, 1
      %p90 = scmp.ne.s32.totalorder %s85, %s87
      %p91 = scmp.eq.s32.totalorder %s16, 0
      %p92 = por %p90, %p91
      %p93 = scmp.ne.s32.totalorder %s85, %s87
      %p94 = scmp.eq.s32.totalorder %s21, 1
      %p95 = por %p93, %p94
      %p96 = scmp.ne.s32.totalorder %s87, %s88
      %p97 = scmp.eq.s32.totalorder %s21, 0
      %p98 = por %p96, %p97
      %p99 = scmp.ne.s32.totalorder %s87, %s88
      %p100 = scmp.eq.s32.totalorder %s22, 1
      %p101 = por %p99, %p100
      %p103 = scmp.ne.s32.totalorder %s88, %s102
      %p104 = scmp.eq.s32.totalorder %s22, 0
      %p105 = por %p103, %p104
      %s107 = sadd.s32 %s106, 1
      %p110 = scmp.eq.s32.totalorder %s16, 1
      %p111 = scmp.ne.s32.totalorder %s106, %s108
      %p112 = scmp.eq.s32.totalorder %s16, 0
      %p113 = por %p111, %p112
      %p114 = scmp.ne.s32.totalorder %s106, %s108
      %p115 = scmp.eq.s32.totalorder %s21, 1
      %p116 = por %p114, %p115
      %p117 = scmp.ne.s32.totalorder %s108, %s109
      %p118 = scmp.eq.s32.totalorder %s21, 0
      %p119 = por %p117, %p118
      %p120 = scmp.ne.s32.totalorder %s108, %s109
      %p121 = scmp.eq.s32.totalorder %s22, 1
      %p122 = por %p120, %p121
      %p124 = scmp.ne.s32.totalorder %s109, %s123
      %p125 = scmp.eq.s32.totalorder %s22, 0
      %p126 = por %p124, %p125
      %s127 = ssub.s32 %s23, %s35
      %s128 = ssub.s32 %s24, %s31
      %s129 = sor.u32 %s127, %s128
      %p130 = scmp.eq.s32.totalorder %s129, 0
      %s132 = sadd.s32 %s131, 1
      %s133 = scalar_select %p130, %s131, %s132
      %p136 = pneg %p130
      %p137 = scmp.eq.s32.totalorder %s16, 1
      %p138 = por %p136, %p137
      %p139 = scmp.ne.s32.totalorder %s131, %s134
      %p140 = scmp.eq.s32.totalorder %s16, 0
      %p141 = por %p139, %p140
      %p142 = scmp.ne.s32.totalorder %s131, %s134
      %p143 = scmp.eq.s32.totalorder %s21, 1
      %p144 = por %p142, %p143
      %p145 = scmp.ne.s32.totalorder %s134, %s135
      %p146 = scmp.eq.s32.totalorder %s21, 0
      %p147 = por %p145, %p146
      %p148 = scmp.ne.s32.totalorder %s134, %s135
      %p149 = scmp.eq.s32.totalorder %s22, 1
      %p150 = por %p148, %p149
      %p152 = scmp.ne.s32.totalorder %s135, %s151
      %p153 = scmp.eq.s32.totalorder %s22, 0
      %p154 = por %p152, %p153
      %p155 = scmp.le.s32.totalorder 1, %s16
      %p156 = scmp.lt.s32.totalorder %s16, 3
      %p157 = pnand %p155, %p156
      %p158 = pneg %p157
      // Predicated region
      $region9: #{tpu_custom_call.1} parent=5 // pred_check
        _
      $region10: #{tpu_custom_call.1} parent=5 // pred_check_branch
        %160 = sbr.rel (%p157) target = $region12
      $region11: #{tpu_custom_call.1} parent=5 // pred_region
        %s161 = ssub.s32 %s16, 1
        // Predicated region
        $region13: #{tpu_custom_call.1} parent=11 // pred_check
          %p162 = pneg %p77
        $region14: #{tpu_custom_call.1} parent=11 // pred_check_branch
          %164 = sbr.rel (%p162) target = $region16
        $region15: #{tpu_custom_call.1} parent=11 // pred_region
          _
        $region16: #{tpu_custom_call.1} parent=11 // pred_fallthru
          _
        // Predicated region
        $region17: #{tpu_custom_call.1} parent=11 // pred_check
          %p165 = pneg %p98
        $region18: #{tpu_custom_call.1} parent=11 // pred_check_branch
          %167 = sbr.rel (%p165) target = $region20
        $region19: #{tpu_custom_call.1} parent=11 // pred_region
          _
        $region20: #{tpu_custom_call.1} parent=11 // pred_fallthru
          _
        // Predicated region
        $region21: #{tpu_custom_call.1} parent=11 // pred_check
          %p168 = pneg %p119
        $region22: #{tpu_custom_call.1} parent=11 // pred_check_branch
          %170 = sbr.rel (%p168) target = $region24
        $region23: #{tpu_custom_call.1} parent=11 // pred_region
          _
        $region24: #{tpu_custom_call.1} parent=11 // pred_fallthru
          _
      $region12: #{tpu_custom_call.1} parent=5 // pred_fallthru
        _
      %p171 = scmp.lt.s32.totalorder %s16, 2
      // Predicated region
      $region25: #{tpu_custom_call.1} parent=5 // pred_check
        %p172 = pneg %p171
      $region26: #{tpu_custom_call.1} parent=5 // pred_check_branch
        %174 = sbr.rel (%p172) target = $region28
      $region27: #{tpu_custom_call.1} parent=5 // pred_region
        // Predicated region
        $region29: #{tpu_custom_call.1} parent=27 // pred_check
          %p175 = pneg %p50
        $region30: #{tpu_custom_call.1} parent=27 // pred_check_branch
          %177 = sbr.rel (%p175) target = $region32
        $region31: #{tpu_custom_call.1} parent=27 // pred_region
          %s178 = sand.u32 %s40, 1
          %s179 = scalar_lea.sflag [#allocation3], %s178
          %s180 = sand.u32 %s40, 1
          %s181 = smul.addr %s180, 128
          %s182 = scalar_lea.vmem [#allocation2], %s181
          %s183 = smul.u32 4, %s24
          %s185 = ssub.s32 2048, 2048
          %186 = vsyncadd %s179, %s185
          %s187 = smul.addr %s183, 2
          %s188 = smul.addr %s23, 16
          %s189 = sadd.s32 %s187, %s188
          %s190 = smul.addr %s189, 128
          %s191 = scalar_lea.hbm %s0, %s190
          %s192 = sshll.u32 %s182, 4
          %s193 = int_to_ptr.vmem [resolvable:$true] %s192
          %198 = dma.hbm_to_vmem [thread:$0]  %s191, 2048, %s193, %s179, 256, 256, 16
        $region32: #{tpu_custom_call.1} parent=27 // pred_fallthru
          _
      $region28: #{tpu_custom_call.1} parent=5 // pred_fallthru
        _
      %p199 = scmp.le.s32.totalorder 1, %s16
      %p200 = scmp.lt.s32.totalorder %s16, 3
      %p201 = pnand %p199, %p200
      %p202 = pneg %p201
      // Predicated region
      $region33: #{tpu_custom_call.1} parent=5 // pred_check
        _
      $region34: #{tpu_custom_call.1} parent=5 // pred_check_branch
        %204 = sbr.rel (%p201) target = $region36
      $region35: #{tpu_custom_call.1} parent=5 // pred_region
        %s205 = ssub.s32 %s16, 1
        %s206 = sand.u32 %s43, 1
        %s207 = scalar_lea.sflag [#allocation3], %s206
        %s208 = sand.u32 %s43, 1
        %s209 = smul.addr %s208, 128
        %s210 = scalar_lea.vmem [#allocation2], %s209
        // Predicated region
        $region37: #{tpu_custom_call.1} parent=35 // pred_check
          %p211 = pneg %p56
        $region38: #{tpu_custom_call.1} parent=35 // pred_check_branch
          %213 = sbr.rel (%p211) target = $region40
        $region39: #{tpu_custom_call.1} parent=35 // pred_region
          %214 = dma.done %s207, 2048
        $region40: #{tpu_custom_call.1} parent=35 // pred_fallthru
          _
        %s215 = sand.u32 %s43, 1
        %s216 = scalar_lea.sflag [#allocation3], %s215
        %s217 = sand.u32 %s43, 1
        %s218 = smul.addr %s217, 128
        %s219 = scalar_lea.vmem [#allocation2], %s218
        %p220 = pneg %p56
        %p221 = pneg %p53
        %p222 = pneg %p77
        %p223 = pneg %p74
        %p224 = pneg %p98
        %p225 = pneg %p95
        %p226 = pneg %p119
        %p227 = pneg %p116
        %p228 = pneg %p147
        %p229 = pneg %p144
        %s230 = sand.u32 %s134, 1
        %s231 = scalar_lea.sflag [#allocation4], %s230
        %s232 = sand.u32 %s134, 1
        %s233 = smul.addr %s232, 128
        %s234 = scalar_lea.vmem [#allocation5], %s233
        %s235 = smul.u32 4, %s26
        %s236 = smul.u32 4, %s26
        %v237 = vld [vmem:[%s210] sm:$0xff]
        %v238 = vld [vmem:[%s210 + $0x8] sm:$0xff]
        %v239 = vld [vmem:[%s210 + $0x10] sm:$0xff]
        %v240 = vld [vmem:[%s210 + $0x18] sm:$0xff]
        %v241 = vld [vmem:[%s210 + $0x20] sm:$0xff]
        %v242 = vld [vmem:[%s210 + $0x28] sm:$0xff]
        %v243 = vld [vmem:[%s210 + $0x30] sm:$0xff]
        %v244 = vld [vmem:[%s210 + $0x38] sm:$0xff]
        %v245 = vld [vmem:[%s210 + $0x40] sm:$0xff]
        %v246 = vld [vmem:[%s210 + $0x48] sm:$0xff]
        %v247 = vld [vmem:[%s210 + $0x50] sm:$0xff]
        %v248 = vld [vmem:[%s210 + $0x58] sm:$0xff]
        %v249 = vld [vmem:[%s210 + $0x60] sm:$0xff]
        %v250 = vld [vmem:[%s210 + $0x68] sm:$0xff]
        %v251 = vld [vmem:[%s210 + $0x70] sm:$0xff]
        %v252 = vld [vmem:[%s210 + $0x78] sm:$0xff]
        %v253 = vadd.f32 %v237, %v238
        %254 = vadd.xlane.f32.xlu0 %v253
        %v255 = vpop.xlane.xlu0 %254
        %v256 = vadd.f32 %v239, %v240
        %257 = vadd.xlane.f32.xlu0 %v256
        %v258 = vpop.xlane.xlu0 %257
        %v259 = vadd.f32 %v241, %v242
        %260 = vadd.xlane.f32.xlu0 %v259
        %v261 = vpop.xlane.xlu0 %260
        %v262 = vadd.f32 %v243, %v244
        %263 = vadd.xlane.f32.xlu0 %v262
        %v264 = vpop.xlane.xlu0 %263
        %v265 = vadd.f32 %v245, %v246
        %266 = vadd.xlane.f32.xlu0 %v265
        %v267 = vpop.xlane.xlu0 %266
        %v268 = vadd.f32 %v247, %v248
        %269 = vadd.xlane.f32.xlu0 %v268
        %v270 = vpop.xlane.xlu0 %269
        %v271 = vadd.f32 %v249, %v250
        %272 = vadd.xlane.f32.xlu0 %v271
        %v273 = vpop.xlane.xlu0 %272
        %v274 = vadd.f32 %v251, %v252
        %275 = vadd.xlane.f32.xlu0 %v274
        %v276 = vpop.xlane.xlu0 %275
        %v277 = vmul.f32 %v255, 0.00390625
        %v278 = vmul.f32 %v258, 0.00390625
        %v279 = vmul.f32 %v261, 0.00390625
        %v280 = vmul.f32 %v264, 0.00390625
        %v281 = vmul.f32 %v267, 0.00390625
        %v282 = vmul.f32 %v270, 0.00390625
        %v283 = vmul.f32 %v273, 0.00390625
        %v284 = vmul.f32 %v276, 0.00390625
        %v285 = vmul.f32 %v237, %v237
        %v286 = vmul.f32 %v238, %v238
        %v287 = vmul.f32 %v239, %v239
        %v288 = vmul.f32 %v240, %v240
        %v289 = vmul.f32 %v241, %v241
        %v290 = vmul.f32 %v242, %v242
        %v291 = vmul.f32 %v243, %v243
        %v292 = vmul.f32 %v244, %v244
        %v293 = vmul.f32 %v245, %v245
        %v294 = vmul.f32 %v246, %v246
        %v295 = vmul.f32 %v247, %v247
        %v296 = vmul.f32 %v248, %v248
        %v297 = vmul.f32 %v249, %v249
        %v298 = vmul.f32 %v250, %v250
        %v299 = vmul.f32 %v251, %v251
        %v300 = vmul.f32 %v252, %v252
        %v301 = vadd.f32 %v285, %v286
        %302 = vadd.xlane.f32.xlu0 %v301
        %v303 = vpop.xlane.xlu0 %302
        %v304 = vadd.f32 %v287, %v288
        %305 = vadd.xlane.f32.xlu0 %v304
        %v306 = vpop.xlane.xlu0 %305
        %v307 = vadd.f32 %v289, %v290
        %308 = vadd.xlane.f32.xlu0 %v307
        %v309 = vpop.xlane.xlu0 %308
        %v310 = vadd.f32 %v291, %v292
        %311 = vadd.xlane.f32.xlu0 %v310
        %v312 = vpop.xlane.xlu0 %311
        %v313 = vadd.f32 %v293, %v294
        %314 = vadd.xlane.f32.xlu0 %v313
        %v315 = vpop.xlane.xlu0 %314
        %v316 = vadd.f32 %v295, %v296
        %317 = vadd.xlane.f32.xlu0 %v316
        %v318 = vpop.xlane.xlu0 %317
        %v319 = vadd.f32 %v297, %v298
        %320 = vadd.xlane.f32.xlu0 %v319
        %v321 = vpop.xlane.xlu0 %320
        %v322 = vadd.f32 %v299, %v300
        %323 = vadd.xlane.f32.xlu0 %v322
        %v324 = vpop.xlane.xlu0 %323
        %v325 = vmax.f32 %v237, %v238
        %326 = vmax.xlane.f32.xlu0 %v325
        %v327 = vpop.xlane.xlu0 %326
        %v328 = vmax.f32 %v239, %v240
        %329 = vmax.xlane.f32.xlu0 %v328
        %v330 = vpop.xlane.xlu0 %329
        %v331 = vmax.f32 %v241, %v242
        %332 = vmax.xlane.f32.xlu0 %v331
        %v333 = vpop.xlane.xlu0 %332
        %v334 = vmax.f32 %v243, %v244
        %335 = vmax.xlane.f32.xlu0 %v334
        %v336 = vpop.xlane.xlu0 %335
        %v337 = vmax.f32 %v245, %v246
        %338 = vmax.xlane.f32.xlu0 %v337
        %v339 = vpop.xlane.xlu0 %338
        %v340 = vmax.f32 %v247, %v248
        %341 = vmax.xlane.f32.xlu0 %v340
        %v342 = vpop.xlane.xlu0 %341
        %v343 = vmax.f32 %v249, %v250
        %344 = vmax.xlane.f32.xlu0 %v343
        %v345 = vpop.xlane.xlu0 %344
        %v346 = vmax.f32 %v251, %v252
        %347 = vmax.xlane.f32.xlu0 %v346
        %v348 = vpop.xlane.xlu0 %347
        %v349 = vmul.f32 %v303, 0.00390625
        %v350 = vmul.f32 %v306, 0.00390625
        %v351 = vmul.f32 %v309, 0.00390625
        %v352 = vmul.f32 %v312, 0.00390625
        %v353 = vmul.f32 %v315, 0.00390625
        %v354 = vmul.f32 %v318, 0.00390625
        %v355 = vmul.f32 %v321, 0.00390625
        %v356 = vmul.f32 %v324, 0.00390625
        %v357 = vmul.f32 %v277, %v277
        %v358 = vmul.f32 %v278, %v278
        %v359 = vmul.f32 %v279, %v279
        %v360 = vmul.f32 %v280, %v280
        %v361 = vmul.f32 %v281, %v281
        %v362 = vmul.f32 %v282, %v282
        %v363 = vmul.f32 %v283, %v283
        %v364 = vmul.f32 %v284, %v284
        %v365 = vsub.f32 %v349, %v357
        %v366 = vsub.f32 %v350, %v358
        %v367 = vsub.f32 %v351, %v359
        %v368 = vsub.f32 %v352, %v360
        %v369 = vsub.f32 %v353, %v361
        %v370 = vsub.f32 %v354, %v362
        %v371 = vsub.f32 %v355, %v363
        %v372 = vsub.f32 %v356, %v364
        %v373 = vmax.f32 %v365, 0.0
        %v374 = vmax.f32 %v366, 0.0
        %v375 = vmax.f32 %v367, 0.0
        %v376 = vmax.f32 %v368, 0.0
        %v377 = vmax.f32 %v369, 0.0
        %v378 = vmax.f32 %v370, 0.0
        %v379 = vmax.f32 %v371, 0.0
        %v380 = vmax.f32 %v372, 0.0
        %v381 = vadd.f32 %v373, 1e-05
        %v382 = vadd.f32 %v374, 1e-05
        %v383 = vadd.f32 %v375, 1e-05
        %v384 = vadd.f32 %v376, 1e-05
        %v385 = vadd.f32 %v377, 1e-05
        %v386 = vadd.f32 %v378, 1e-05
        %v387 = vadd.f32 %v379, 1e-05
        %v388 = vadd.f32 %v380, 1e-05
        %v389 = vrsqrt.pop %v381
        %v390 = vrsqrt.pop %v382
        %v391 = vrsqrt.pop %v383
        %v392 = vrsqrt.pop %v384
        %v393 = vrsqrt.pop %v385
        %v394 = vrsqrt.pop %v386
        %v395 = vrsqrt.pop %v387
        %v396 = vrsqrt.pop %v388
        %v405 = vlaneseq
        %v406 = vand.u32 %v405, 127
        %v407 = vlaneseq
        %v408 = vshrl.u32 %v407, 7
        %v409 = vsub.s32 %v406, %v408
        %v410 = vrot.slane %v277, %v409
        %v411 = vlaneseq
        %v412 = vshrl.u32 %v411, 7
        %v413 = vsub.s32 %v406, %v412
        %v414 = vrot.slane %v278, %v413
        %v415 = vlaneseq
        %v416 = vshrl.u32 %v415, 7
        %v417 = vsub.s32 %v406, %v416
        %v418 = vrot.slane %v279, %v417
        %v419 = vlaneseq
        %v420 = vshrl.u32 %v419, 7
        %v421 = vsub.s32 %v406, %v420
        %v422 = vrot.slane %v280, %v421
        %v423 = vlaneseq
        %v424 = vshrl.u32 %v423, 7
        %v425 = vsub.s32 %v406, %v424
        %v426 = vrot.slane %v281, %v425
        %v427 = vlaneseq
        %v428 = vshrl.u32 %v427, 7
        %v429 = vsub.s32 %v406, %v428
        %v430 = vrot.slane %v282, %v429
        %v431 = vlaneseq
        %v432 = vshrl.u32 %v431, 7
        %v433 = vsub.s32 %v406, %v432
        %v434 = vrot.slane %v283, %v433
        %v435 = vlaneseq
        %v436 = vshrl.u32 %v435, 7
        %v437 = vsub.s32 %v406, %v436
        %v438 = vrot.slane %v284, %v437
        %vm439 = vcmask 1041409
        %v440 = vsel %vm439, %v414, %v410
        %vm441 = vcmask 1042434
        %v442 = vsel %vm441, %v418, %v440
        %vm443 = vcmask 1043459
        %v444 = vsel %vm443, %v422, %v442
        %vm445 = vcmask 1044484
        %v446 = vsel %vm445, %v426, %v444
        %vm447 = vcmask 1045509
        %v448 = vsel %vm447, %v430, %v446
        %vm449 = vcmask 1046534
        %v450 = vsel %vm449, %v434, %v448
        %vm451 = vcmask 1047559
        %v452 = vsel %vm451, %v438, %v450
        %v461 = vlaneseq
        %v462 = vshrl.u32 %v461, 7
        %v463 = vsub.s32 %v406, %v462
        %v464 = vrot.slane %v327, %v463
        %v465 = vlaneseq
        %v466 = vshrl.u32 %v465, 7
        %v467 = vsub.s32 %v406, %v466
        %v468 = vrot.slane %v330, %v467
        %v469 = vlaneseq
        %v470 = vshrl.u32 %v469, 7
        %v471 = vsub.s32 %v406, %v470
        %v472 = vrot.slane %v333, %v471
        %v473 = vlaneseq
        %v474 = vshrl.u32 %v473, 7
        %v475 = vsub.s32 %v406, %v474
        %v476 = vrot.slane %v336, %v475
        %v477 = vlaneseq
        %v478 = vshrl.u32 %v477, 7
        %v479 = vsub.s32 %v406, %v478
        %v480 = vrot.slane %v339, %v479
        %v481 = vlaneseq
        %v482 = vshrl.u32 %v481, 7
        %v483 = vsub.s32 %v406, %v482
        %v484 = vrot.slane %v342, %v483
        %v485 = vlaneseq
        %v486 = vshrl.u32 %v485, 7
        %v487 = vsub.s32 %v406, %v486
        %v488 = vrot.slane %v345, %v487
        %v489 = vlaneseq
        %v490 = vshrl.u32 %v489, 7
        %v491 = vsub.s32 %v406, %v490
        %v492 = vrot.slane %v348, %v491
        %v493 = vsel %vm439, %v468, %v464
        %v494 = vsel %vm441, %v472, %v493
        %v495 = vsel %vm443, %v476, %v494
        %v496 = vsel %vm445, %v480, %v495
        %v497 = vsel %vm447, %v484, %v496
        %v498 = vsel %vm449, %v488, %v497
        %v499 = vsel %vm451, %v492, %v498
        %v500 = vld [vmem:[%s1] sm:$0xff]
        %vm501 = vcmask 64512
        %v502 = vsel %vm501, %v452, 0
        %v504 = vsel %vm501, %v499, 0
        %506 = vmatprep.subr.mxu0 0.0
        %507 = vmatpush1.msra.mxu0 0.0
        %508 = vmatprep.subr.mxu0 0.0
        %509 = vmatpush1.msra.mxu0 0.0
        %510 = vmatprep.subr.mxu0 0.0
        %511 = vmatpush1.msra.mxu0 0.0
        %512 = vmatprep.subr.mxu0 0.0
        %513 = vmatpush1.msra.mxu0 0.0
        %514 = vmatprep.subr.mxu0 0.0
        %515 = vmatpush1.msra.mxu0 0.0
        %516 = vmatprep.subr.mxu0 0.0
        %517 = vmatpush1.msra.mxu0 0.0
        %518 = vmatprep.subr.mxu0 0.0
        %519 = vmatpush1.msra.mxu0 0.0
        %520 = vmatprep.subr.mxu0 0.0
        %521 = vmatpush1.msra.mxu0 0.0
        %522 = vmatprep.subr.mxu0 0.0
        %523 = vmatpush1.msra.mxu0 0.0
        %524 = vmatprep.subr.mxu0 0.0
        %525 = vmatpush1.msra.mxu0 0.0
        %526 = vmatprep.subr.mxu0 0.0
        %527 = vmatpush1.msra.mxu0 0.0
        %528 = vmatprep.subr.mxu0 0.0
        %529 = vmatpush1.msra.mxu0 0.0
        %530 = vmatprep.subr.mxu0 0.0
        %531 = vmatpush1.msra.mxu0 0.0
        %532 = vmatprep.subr.mxu0 0.0
        %533 = vmatpush1.msra.mxu0 0.0
        %534 = vmatprep.subr.mxu0 0.0
        %535 = vmatpush1.msra.mxu0 0.0
        %536 = vmatprep.subr.mxu0 0.0
        %537 = vmatpush1.msra.mxu0 %v500
        %538 = vmatprep.subr.mxu0 0.0
        %539 = vmatpush2.msra.mxu0 0.0
        %540 = vmatprep.subr.mxu0 0.0
        %541 = vmatpush2.msra.mxu0 0.0
        %542 = vmatprep.subr.mxu0 0.0
        %543 = vmatpush2.msra.mxu0 0.0
        %544 = vmatprep.subr.mxu0 0.0
        %545 = vmatpush2.msra.mxu0 0.0
        %546 = vmatprep.subr.mxu0 0.0
        %547 = vmatpush2.msra.mxu0 0.0
        %548 = vmatprep.subr.mxu0 0.0
        %549 = vmatpush2.msra.mxu0 0.0
        %550 = vmatprep.subr.mxu0 0.0
        %551 = vmatpush2.msra.mxu0 0.0
        %552 = vmatprep.subr.mxu0 0.0
        %553 = vmatpush2.msra.mxu0 0.0
        %554 = vmatprep.subr.mxu0 0.0
        %555 = vmatpush2.msra.mxu0 0.0
        %556 = vmatprep.subr.mxu0 0.0
        %557 = vmatpush2.msra.mxu0 0.0
        %558 = vmatprep.subr.mxu0 0.0
        %559 = vmatpush2.msra.mxu0 0.0
        %560 = vmatprep.subr.mxu0 0.0
        %561 = vmatpush2.msra.mxu0 0.0
        %562 = vmatprep.subr.mxu0 0.0
        %563 = vmatpush2.msra.mxu0 0.0
        %564 = vmatprep.subr.mxu0 0.0
        %565 = vmatpush2.msra.mxu0 0.0
        %566 = vmatprep.subr.mxu0 0.0
        %567 = vmatpush2.msra.mxu0 0.0
        %568 = vmatprep.subr.mxu0 0.0
        %569 = vmatpush2.msra.mxu0 0.0
        %570 = vmatprep.mubr.f32.mxu0 0.0
        %571 = vmatmul.mubr.f32.gmra.mxu0 %v502
        %v572 = vpop.f32.mrf.mxu0
        %v573 = vadd.f32 0.0, %v572
        %v574 = vpop.f32.mrf.mxu0
        %575 = vmatprep.mubr.f32.mxu0 0.0
        %576 = vmatmul.mubr.f32.gmra.mxu0 %v504
        %v577 = vpop.f32.mrf.mxu0
        %v578 = vadd.f32 0.0, %v577
        %v579 = vpop.f32.mrf.mxu0
        %580 = vdwg.mxu0
        %v581 = vmax.f32 %v573, 0.0
        %v582 = vmax.f32 %v578, 0.0
        %v583 = vld [vmem:[%s2] sm:$0xff]
        %v584 = vld [vmem:[%s2 + $0x8] sm:$0xff]
        %v585 = vld [vmem:[%s2 + $0x10] sm:$0xff]
        %v586 = vld [vmem:[%s2 + $0x18] sm:$0xff]
        %v587 = vld [vmem:[%s2 + $0x20] sm:$0xff]
        %v588 = vld [vmem:[%s2 + $0x28] sm:$0xff]
        %v589 = vld [vmem:[%s2 + $0x30] sm:$0xff]
        %v590 = vld [vmem:[%s2 + $0x38] sm:$0xff]
        %vm591 = vcmask 523264
        %v593 = vsel %vm591, %v581, 0
        %v596 = vsel %vm591, %v582, 0
        %598 = vmatprep.subr.mxu0 0.0
        %599 = vmatpush1.msra.mxu0 0.0
        %600 = vmatprep.subr.mxu0 0.0
        %601 = vmatpush1.msra.mxu0 0.0
        %602 = vmatprep.subr.mxu0 0.0
        %603 = vmatpush1.msra.mxu0 0.0
        %604 = vmatprep.subr.mxu0 0.0
        %605 = vmatpush1.msra.mxu0 0.0
        %606 = vmatprep.subr.mxu0 0.0
        %607 = vmatpush1.msra.mxu0 0.0
        %608 = vmatprep.subr.mxu0 0.0
        %609 = vmatpush1.msra.mxu0 0.0
        %610 = vmatprep.subr.mxu0 0.0
        %611 = vmatpush1.msra.mxu0 0.0
        %612 = vmatprep.subr.mxu0 0.0
        %613 = vmatpush1.msra.mxu0 0.0
        %614 = vmatprep.subr.mxu0 0.0
        %615 = vmatpush1.msra.mxu0 %v590
        %616 = vmatprep.subr.mxu0 0.0
        %617 = vmatpush1.msra.mxu0 %v589
        %618 = vmatprep.subr.mxu0 0.0
        %619 = vmatpush1.msra.mxu0 %v588
        %620 = vmatprep.subr.mxu0 0.0
        %621 = vmatpush1.msra.mxu0 %v587
        %622 = vmatprep.subr.mxu0 0.0
        %623 = vmatpush1.msra.mxu0 %v586
        %624 = vmatprep.subr.mxu0 0.0
        %625 = vmatpush1.msra.mxu0 %v585
        %626 = vmatprep.subr.mxu0 0.0
        %627 = vmatpush1.msra.mxu0 %v584
        %628 = vmatprep.subr.mxu0 0.0
        %629 = vmatpush1.msra.mxu0 %v583
        %630 = vmatprep.subr.mxu0 0.0
        %631 = vmatpush2.msra.mxu0 0.0
        %632 = vmatprep.subr.mxu0 0.0
        %633 = vmatpush2.msra.mxu0 0.0
        %634 = vmatprep.subr.mxu0 0.0
        %635 = vmatpush2.msra.mxu0 0.0
        %636 = vmatprep.subr.mxu0 0.0
        %637 = vmatpush2.msra.mxu0 0.0
        %638 = vmatprep.subr.mxu0 0.0
        %639 = vmatpush2.msra.mxu0 0.0
        %640 = vmatprep.subr.mxu0 0.0
        %641 = vmatpush2.msra.mxu0 0.0
        %642 = vmatprep.subr.mxu0 0.0
        %643 = vmatpush2.msra.mxu0 0.0
        %644 = vmatprep.subr.mxu0 0.0
        %645 = vmatpush2.msra.mxu0 0.0
        %646 = vmatprep.subr.mxu0 0.0
        %647 = vmatpush2.msra.mxu0 0.0
        %648 = vmatprep.subr.mxu0 0.0
        %649 = vmatpush2.msra.mxu0 0.0
        %650 = vmatprep.subr.mxu0 0.0
        %651 = vmatpush2.msra.mxu0 0.0
        %652 = vmatprep.subr.mxu0 0.0
        %653 = vmatpush2.msra.mxu0 0.0
        %654 = vmatprep.subr.mxu0 0.0
        %655 = vmatpush2.msra.mxu0 0.0
        %656 = vmatprep.subr.mxu0 0.0
        %657 = vmatpush2.msra.mxu0 0.0
        %658 = vmatprep.subr.mxu0 0.0
        %659 = vmatpush2.msra.mxu0 0.0
        %660 = vmatprep.subr.mxu0 0.0
        %661 = vmatpush2.msra.mxu0 0.0
        %662 = vmatprep.mubr.f32.mxu0 0.0
        %663 = vmatmul.mubr.f32.gmra.mxu0 %v593
        %v664 = vpop.f32.mrf.mxu0
        %v665 = vadd.f32 0.0, %v664
        %v666 = vpop.f32.mrf.mxu0
        %667 = vmatprep.mubr.f32.mxu0 0.0
        %668 = vmatmul.mubr.f32.gmra.mxu0 %v596
        %v669 = vpop.f32.mrf.mxu0
        %v670 = vadd.f32 0.0, %v669
        %v671 = vpop.f32.mrf.mxu0
        %672 = vdwg.mxu0
        %v674 = vcombine.high %v665, %v665
        %v676 = vcombine.high %v670, %v670
        %v677 = vld [vmem:[%s3] sm:$0xf]
        %v678 = vrot.slane %v277, 4
        %v679 = vrot.slane %v278, 4
        %v680 = vrot.slane %v279, 4
        %v681 = vrot.slane %v280, 4
        %v682 = vrot.slane %v281, 4
        %v683 = vrot.slane %v282, 4
        %v684 = vrot.slane %v283, 4
        %v685 = vrot.slane %v284, 4
        %v694 = vadd.f32 %v277, %v678
        %v695 = vadd.f32 %v278, %v679
        %v696 = vadd.f32 %v279, %v680
        %v697 = vadd.f32 %v280, %v681
        %v698 = vadd.f32 %v281, %v682
        %v699 = vadd.f32 %v282, %v683
        %v700 = vadd.f32 %v283, %v684
        %v701 = vadd.f32 %v284, %v685
        %v702 = vadd.f32 %v694, %v327
        %v703 = vadd.f32 %v695, %v330
        %v704 = vadd.f32 %v696, %v333
        %v705 = vadd.f32 %v697, %v336
        %v706 = vadd.f32 %v698, %v339
        %v707 = vadd.f32 %v699, %v342
        %v708 = vadd.f32 %v700, %v345
        %v709 = vadd.f32 %v701, %v348
        %v710 = vrot.slane %v327, 4
        %v711 = vrot.slane %v330, 4
        %v712 = vrot.slane %v333, 4
        %v713 = vrot.slane %v336, 4
        %v714 = vrot.slane %v339, 4
        %v715 = vrot.slane %v342, 4
        %v716 = vrot.slane %v345, 4
        %v717 = vrot.slane %v348, 4
        %v726 = vadd.f32 %v702, %v710
        %v727 = vadd.f32 %v703, %v711
        %v728 = vadd.f32 %v704, %v712
        %v729 = vadd.f32 %v705, %v713
        %v730 = vadd.f32 %v706, %v714
        %v731 = vadd.f32 %v707, %v715
        %v732 = vadd.f32 %v708, %v716
        %v733 = vadd.f32 %v709, %v717
        %v734 = vlaneseq
        %v735 = vshrl.u32 %v734, 7
        %v736 = vsub.s32 0, %v735
        %v737 = vrot.slane %v665, %v736
        %739 = vbcast.lane.b32.xlu0 %v737, 256
        %v740 = vpop.permute.xlu0 %739
        %v741 = vlaneseq
        %v742 = vshrl.u32 %v741, 7
        %v743 = vsub.s32 1, %v742
        %v744 = vrot.slane %v665, %v743
        %746 = vbcast.lane.b32.xlu0 %v744, 256
        %v747 = vpop.permute.xlu0 %746
        %v748 = vlaneseq
        %v749 = vshrl.u32 %v748, 7
        %v750 = vsub.s32 2, %v749
        %v751 = vrot.slane %v665, %v750
        %753 = vbcast.lane.b32.xlu0 %v751, 256
        %v754 = vpop.permute.xlu0 %753
        %v755 = vlaneseq
        %v756 = vshrl.u32 %v755, 7
        %v757 = vsub.s32 3, %v756
        %v758 = vrot.slane %v665, %v757
        %760 = vbcast.lane.b32.xlu0 %v758, 256
        %v761 = vpop.permute.xlu0 %760
        %v762 = vlaneseq
        %v763 = vshrl.u32 %v762, 7
        %v764 = vsub.s32 0, %v763
        %v765 = vrot.slane %v674, %v764
        %767 = vbcast.lane.b32.xlu0 %v765, 256
        %v768 = vpop.permute.xlu0 %767
        %v769 = vlaneseq
        %v770 = vshrl.u32 %v769, 7
        %v771 = vsub.s32 1, %v770
        %v772 = vrot.slane %v674, %v771
        %774 = vbcast.lane.b32.xlu0 %v772, 256
        %v775 = vpop.permute.xlu0 %774
        %v776 = vlaneseq
        %v777 = vshrl.u32 %v776, 7
        %v778 = vsub.s32 2, %v777
        %v779 = vrot.slane %v674, %v778
        %781 = vbcast.lane.b32.xlu0 %v779, 256
        %v782 = vpop.permute.xlu0 %781
        %v783 = vlaneseq
        %v784 = vshrl.u32 %v783, 7
        %v785 = vsub.s32 3, %v784
        %v786 = vrot.slane %v674, %v785
        %788 = vbcast.lane.b32.xlu0 %v786, 256
        %v789 = vpop.permute.xlu0 %788
        %v798 = vadd.f32 %v726, %v740
        %v799 = vadd.f32 %v727, %v747
        %v800 = vadd.f32 %v728, %v754
        %v801 = vadd.f32 %v729, %v761
        %v802 = vadd.f32 %v730, %v768
        %v803 = vadd.f32 %v731, %v775
        %v804 = vadd.f32 %v732, %v782
        %v805 = vadd.f32 %v733, %v789
        %v806 = vlaneseq
        %v807 = vshrl.u32 %v806, 7
        %v808 = vsub.s32 0, %v807
        %v809 = vrot.slane %v670, %v808
        %811 = vbcast.lane.b32.xlu0 %v809, 256
        %v812 = vpop.permute.xlu0 %811
        %v813 = vlaneseq
        %v814 = vshrl.u32 %v813, 7
        %v815 = vsub.s32 1, %v814
        %v816 = vrot.slane %v670, %v815
        %818 = vbcast.lane.b32.xlu0 %v816, 256
        %v819 = vpop.permute.xlu0 %818
        %v820 = vlaneseq
        %v821 = vshrl.u32 %v820, 7
        %v822 = vsub.s32 2, %v821
        %v823 = vrot.slane %v670, %v822
        %825 = vbcast.lane.b32.xlu0 %v823, 256
        %v826 = vpop.permute.xlu0 %825
        %v827 = vlaneseq
        %v828 = vshrl.u32 %v827, 7
        %v829 = vsub.s32 3, %v828
        %v830 = vrot.slane %v670, %v829
        %832 = vbcast.lane.b32.xlu0 %v830, 256
        %v833 = vpop.permute.xlu0 %832
        %v834 = vlaneseq
        %v835 = vshrl.u32 %v834, 7
        %v836 = vsub.s32 0, %v835
        %v837 = vrot.slane %v676, %v836
        %839 = vbcast.lane.b32.xlu0 %v837, 256
        %v840 = vpop.permute.xlu0 %839
        %v841 = vlaneseq
        %v842 = vshrl.u32 %v841, 7
        %v843 = vsub.s32 1, %v842
        %v844 = vrot.slane %v676, %v843
        %846 = vbcast.lane.b32.xlu0 %v844, 256
        %v847 = vpop.permute.xlu0 %846
        %v848 = vlaneseq
        %v849 = vshrl.u32 %v848, 7
        %v850 = vsub.s32 2, %v849
        %v851 = vrot.slane %v676, %v850
        %853 = vbcast.lane.b32.xlu0 %v851, 256
        %v854 = vpop.permute.xlu0 %853
        %v855 = vlaneseq
        %v856 = vshrl.u32 %v855, 7
        %v857 = vsub.s32 3, %v856
        %v858 = vrot.slane %v676, %v857
        %860 = vbcast.lane.b32.xlu0 %v858, 256
        %v861 = vpop.permute.xlu0 %860
        %v870 = vadd.f32 %v798, %v812
        %v871 = vadd.f32 %v799, %v819
        %v872 = vadd.f32 %v800, %v826
        %v873 = vadd.f32 %v801, %v833
        %v874 = vadd.f32 %v802, %v840
        %v875 = vadd.f32 %v803, %v847
        %v876 = vadd.f32 %v804, %v854
        %v877 = vadd.f32 %v805, %v861
        %v878 = vlaneseq
        %v879 = vshrl.u32 %v878, 7
        %v880 = vsub.s32 0, %v879
        %v881 = vrot.slane %v677, %v880
        %890 = vset.pattern.permute.xlu0 0
        %891 = vperm.xlu0 %890, %v870
        %v892 = vpop.permute.xlu0 %891
        %893 = vset.pattern.permute.xlu0 0
        %894 = vperm.xlu0 %893, %v871
        %v895 = vpop.permute.xlu0 %894
        %896 = vset.pattern.permute.xlu0 0
        %897 = vperm.xlu0 %896, %v872
        %v898 = vpop.permute.xlu0 %897
        %899 = vset.pattern.permute.xlu0 0
        %900 = vperm.xlu0 %899, %v873
        %v901 = vpop.permute.xlu0 %900
        %902 = vset.pattern.permute.xlu0 0
        %903 = vperm.xlu0 %902, %v874
        %v904 = vpop.permute.xlu0 %903
        %905 = vset.pattern.permute.xlu0 0
        %906 = vperm.xlu0 %905, %v875
        %v907 = vpop.permute.xlu0 %906
        %908 = vset.pattern.permute.xlu0 0
        %909 = vperm.xlu0 %908, %v876
        %v910 = vpop.permute.xlu0 %909
        %911 = vset.pattern.permute.xlu0 0
        %912 = vperm.xlu0 %911, %v877
        %v913 = vpop.permute.xlu0 %912
        %v914 = vlaneseq
        %v915 = vshrl.u32 %v914, 7
        %v916 = vsub.s32 %v406, %v915
        %v917 = vrot.slane %v892, %v916
        %v918 = vlaneseq
        %v919 = vshrl.u32 %v918, 7
        %v920 = vsub.s32 %v406, %v919
        %v921 = vrot.slane %v895, %v920
        %v922 = vlaneseq
        %v923 = vshrl.u32 %v922, 7
        %v924 = vsub.s32 %v406, %v923
        %v925 = vrot.slane %v898, %v924
        %v926 = vlaneseq
        %v927 = vshrl.u32 %v926, 7
        %v928 = vsub.s32 %v406, %v927
        %v929 = vrot.slane %v901, %v928
        %v930 = vlaneseq
        %v931 = vshrl.u32 %v930, 7
        %v932 = vsub.s32 %v406, %v931
        %v933 = vrot.slane %v904, %v932
        %v934 = vlaneseq
        %v935 = vshrl.u32 %v934, 7
        %v936 = vsub.s32 %v406, %v935
        %v937 = vrot.slane %v907, %v936
        %v938 = vlaneseq
        %v939 = vshrl.u32 %v938, 7
        %v940 = vsub.s32 %v406, %v939
        %v941 = vrot.slane %v910, %v940
        %v942 = vlaneseq
        %v943 = vshrl.u32 %v942, 7
        %v944 = vsub.s32 %v406, %v943
        %v945 = vrot.slane %v913, %v944
        %v946 = vsel %vm439, %v921, %v917
        %v947 = vsel %vm441, %v925, %v946
        %v948 = vsel %vm443, %v929, %v947
        %v949 = vsel %vm439, %v937, %v933
        %v950 = vsel %vm441, %v941, %v949
        %v951 = vsel %vm443, %v945, %v950
        %v954 = vmul.f32 %v881, %v948
        %v955 = vmul.f32 %v881, %v951
        %v956 = vlaneseq
        %v957 = vshrl.u32 %v956, 7
        %v958 = vsub.s32 1, %v957
        %v959 = vrot.slane %v677, %v958
        %v960 = vadd.f32 %v954, %v959
        %v961 = vadd.f32 %v955, %v959
        %v962 = vlaneseq
        %v963 = vshrl.u32 %v962, 7
        %v964 = vsub.s32 2, %v963
        %v965 = vrot.slane %v677, %v964
        %v974 = vlaneseq
        %v975 = vshrl.u32 %v974, 7
        %v976 = vsub.s32 %v406, %v975
        %v977 = vrot.slane %v389, %v976
        %v978 = vlaneseq
        %v979 = vshrl.u32 %v978, 7
        %v980 = vsub.s32 %v406, %v979
        %v981 = vrot.slane %v390, %v980
        %v982 = vlaneseq
        %v983 = vshrl.u32 %v982, 7
        %v984 = vsub.s32 %v406, %v983
        %v985 = vrot.slane %v391, %v984
        %v986 = vlaneseq
        %v987 = vshrl.u32 %v986, 7
        %v988 = vsub.s32 %v406, %v987
        %v989 = vrot.slane %v392, %v988
        %v990 = vlaneseq
        %v991 = vshrl.u32 %v990, 7
        %v992 = vsub.s32 %v406, %v991
        %v993 = vrot.slane %v393, %v992
        %v994 = vlaneseq
        %v995 = vshrl.u32 %v994, 7
        %v996 = vsub.s32 %v406, %v995
        %v997 = vrot.slane %v394, %v996
        %v998 = vlaneseq
        %v999 = vshrl.u32 %v998, 7
        %v1000 = vsub.s32 %v406, %v999
        %v1001 = vrot.slane %v395, %v1000
        %v1002 = vlaneseq
        %v1003 = vshrl.u32 %v1002, 7
        %v1004 = vsub.s32 %v406, %v1003
        %v1005 = vrot.slane %v396, %v1004
        %v1006 = vsel %vm439, %v981, %v977
        %v1007 = vsel %vm441, %v985, %v1006
        %v1008 = vsel %vm443, %v989, %v1007
        %v1009 = vsel %vm439, %v997, %v993
        %v1010 = vsel %vm441, %v1001, %v1009
        %v1011 = vsel %vm443, %v1005, %v1010
        %v1014 = vmul.f32 %v965, %v1008
        %v1015 = vmul.f32 %v965, %v1011
        %v1016 = vadd.s32 %v406, 4
        %v1017 = vlaneseq
        %v1018 = vshrl.u32 %v1017, 7
        %v1019 = vsub.s32 %v1016, %v1018
        %v1020 = vrot.slane %v389, %v1019
        %v1021 = vlaneseq
        %v1022 = vshrl.u32 %v1021, 7
        %v1023 = vsub.s32 %v1016, %v1022
        %v1024 = vrot.slane %v390, %v1023
        %v1025 = vlaneseq
        %v1026 = vshrl.u32 %v1025, 7
        %v1027 = vsub.s32 %v1016, %v1026
        %v1028 = vrot.slane %v391, %v1027
        %v1029 = vlaneseq
        %v1030 = vshrl.u32 %v1029, 7
        %v1031 = vsub.s32 %v1016, %v1030
        %v1032 = vrot.slane %v392, %v1031
        %v1033 = vlaneseq
        %v1034 = vshrl.u32 %v1033, 7
        %v1035 = vsub.s32 %v1016, %v1034
        %v1036 = vrot.slane %v393, %v1035
        %v1037 = vlaneseq
        %v1038 = vshrl.u32 %v1037, 7
        %v1039 = vsub.s32 %v1016, %v1038
        %v1040 = vrot.slane %v394, %v1039
        %v1041 = vlaneseq
        %v1042 = vshrl.u32 %v1041, 7
        %v1043 = vsub.s32 %v1016, %v1042
        %v1044 = vrot.slane %v395, %v1043
        %v1045 = vlaneseq
        %v1046 = vshrl.u32 %v1045, 7
        %v1047 = vsub.s32 %v1016, %v1046
        %v1048 = vrot.slane %v396, %v1047
        %v1049 = vsel %vm439, %v1024, %v1020
        %v1050 = vsel %vm441, %v1028, %v1049
        %v1051 = vsel %vm443, %v1032, %v1050
        %v1052 = vsel %vm439, %v1040, %v1036
        %v1053 = vsel %vm441, %v1044, %v1052
        %v1054 = vsel %vm443, %v1048, %v1053
        %v1057 = vmul.f32 %v965, %v1051
        %v1058 = vmul.f32 %v965, %v1054
        %v1059 = vsel %vm439, %v430, %v426
        %v1060 = vsel %vm441, %v434, %v1059
        %v1061 = vsel %vm443, %v438, %v1060
        %v1064 = vmul.f32 %v1014, %v444
        %v1065 = vmul.f32 %v1015, %v1061
        %v1066 = vlaneseq
        %v1067 = vshrl.u32 %v1066, 7
        %v1068 = vsub.s32 3, %v1067
        %v1069 = vrot.slane %v677, %v1068
        %v1070 = vsub.f32 %v1069, %v1064
        %v1071 = vsub.f32 %v1069, %v1065
        %v1072 = vlaneseq
        %v1073 = vshrl.u32 %v1072, 7
        %v1074 = vsub.s32 %v1016, %v1073
        %v1075 = vrot.slane %v277, %v1074
        %v1076 = vlaneseq
        %v1077 = vshrl.u32 %v1076, 7
        %v1078 = vsub.s32 %v1016, %v1077
        %v1079 = vrot.slane %v278, %v1078
        %v1080 = vlaneseq
        %v1081 = vshrl.u32 %v1080, 7
        %v1082 = vsub.s32 %v1016, %v1081
        %v1083 = vrot.slane %v279, %v1082
        %v1084 = vlaneseq
        %v1085 = vshrl.u32 %v1084, 7
        %v1086 = vsub.s32 %v1016, %v1085
        %v1087 = vrot.slane %v280, %v1086
        %v1088 = vlaneseq
        %v1089 = vshrl.u32 %v1088, 7
        %v1090 = vsub.s32 %v1016, %v1089
        %v1091 = vrot.slane %v281, %v1090
        %v1092 = vlaneseq
        %v1093 = vshrl.u32 %v1092, 7
        %v1094 = vsub.s32 %v1016, %v1093
        %v1095 = vrot.slane %v282, %v1094
        %v1096 = vlaneseq
        %v1097 = vshrl.u32 %v1096, 7
        %v1098 = vsub.s32 %v1016, %v1097
        %v1099 = vrot.slane %v283, %v1098
        %v1100 = vlaneseq
        %v1101 = vshrl.u32 %v1100, 7
        %v1102 = vsub.s32 %v1016, %v1101
        %v1103 = vrot.slane %v284, %v1102
        %v1104 = vsel %vm439, %v1079, %v1075
        %v1105 = vsel %vm441, %v1083, %v1104
        %v1106 = vsel %vm443, %v1087, %v1105
        %v1107 = vsel %vm439, %v1095, %v1091
        %v1108 = vsel %vm441, %v1099, %v1107
        %v1109 = vsel %vm443, %v1103, %v1108
        %v1112 = vmul.f32 %v1057, %v1106
        %v1113 = vmul.f32 %v1058, %v1109
        %v1114 = vsub.f32 %v1070, %v1112
        %v1115 = vsub.f32 %v1071, %v1113
        %1118 = vrot.lane.b32.xlu0 %v1014, 4
        %v1119 = vpop.permute.xlu0 %1118
        %1120 = vrot.lane.b32.xlu0 %v1015, 4
        %v1121 = vpop.permute.xlu0 %1120
        %vm1124 = vcmask 31744
        %v1125 = vsel %vm1124, 0.0, %v1119
        %v1126 = vsel %vm1124, 0.0, %v1121
        %v1127 = vsub.f32 0.0, %v1125
        %v1128 = vsub.f32 0.0, %v1126
        %1131 = vrot.lane.b32.xlu0 %v1057, 4
        %v1132 = vpop.permute.xlu0 %1131
        %1133 = vrot.lane.b32.xlu0 %v1058, 4
        %v1134 = vpop.permute.xlu0 %1133
        %v1137 = vsel %vm1124, 0.0, %v1132
        %v1138 = vsel %vm1124, 0.0, %v1134
        %v1139 = vsub.f32 0.0, %v1137
        %v1140 = vsub.f32 0.0, %v1138
        %1143 = vrot.lane.b32.xlu0 %v1114, 4
        %v1144 = vpop.permute.xlu0 %1143
        %1145 = vrot.lane.b32.xlu0 %v1115, 4
        %v1146 = vpop.permute.xlu0 %1145
        %v1149 = vsel %vm1124, %v960, %v1144
        %v1150 = vsel %vm1124, %v961, %v1146
        %v1151 = vsub.f32 0.0, %v1149
        %v1152 = vsub.f32 0.0, %v1150
        %v1153 = vlaneseq
        %v1154 = vshrl.u32 %v1153, 7
        %v1155 = vsub.s32 0, %v1154
        %v1156 = vrot.slane %v1127, %v1155
        %1158 = vbcast.lane.b32.xlu0 %v1156, 256
        %v1159 = vpop.permute.xlu0 %1158
        %v1160 = vlaneseq
        %v1161 = vshrl.u32 %v1160, 7
        %v1162 = vsub.s32 1, %v1161
        %v1163 = vrot.slane %v1127, %v1162
        %1165 = vbcast.lane.b32.xlu0 %v1163, 256
        %v1166 = vpop.permute.xlu0 %1165
        %v1167 = vlaneseq
        %v1168 = vshrl.u32 %v1167, 7
        %v1169 = vsub.s32 2, %v1168
        %v1170 = vrot.slane %v1127, %v1169
        %1172 = vbcast.lane.b32.xlu0 %v1170, 256
        %v1173 = vpop.permute.xlu0 %1172
        %v1174 = vlaneseq
        %v1175 = vshrl.u32 %v1174, 7
        %v1176 = vsub.s32 3, %v1175
        %v1177 = vrot.slane %v1127, %v1176
        %1179 = vbcast.lane.b32.xlu0 %v1177, 256
        %v1180 = vpop.permute.xlu0 %1179
        %v1181 = vlaneseq
        %v1182 = vshrl.u32 %v1181, 7
        %v1183 = vsub.s32 0, %v1182
        %v1184 = vrot.slane %v1128, %v1183
        %1186 = vbcast.lane.b32.xlu0 %v1184, 256
        %v1187 = vpop.permute.xlu0 %1186
        %v1188 = vlaneseq
        %v1189 = vshrl.u32 %v1188, 7
        %v1190 = vsub.s32 1, %v1189
        %v1191 = vrot.slane %v1128, %v1190
        %1193 = vbcast.lane.b32.xlu0 %v1191, 256
        %v1194 = vpop.permute.xlu0 %1193
        %v1195 = vlaneseq
        %v1196 = vshrl.u32 %v1195, 7
        %v1197 = vsub.s32 2, %v1196
        %v1198 = vrot.slane %v1128, %v1197
        %1200 = vbcast.lane.b32.xlu0 %v1198, 256
        %v1201 = vpop.permute.xlu0 %1200
        %v1202 = vlaneseq
        %v1203 = vshrl.u32 %v1202, 7
        %v1204 = vsub.s32 3, %v1203
        %v1205 = vrot.slane %v1128, %v1204
        %1207 = vbcast.lane.b32.xlu0 %v1205, 256
        %v1208 = vpop.permute.xlu0 %1207
        %v1209 = vlaneseq
        %v1210 = vshrl.u32 %v1209, 7
        %v1211 = vsub.s32 0, %v1210
        %v1212 = vrot.slane %v1139, %v1211
        %1214 = vbcast.lane.b32.xlu0 %v1212, 256
        %v1215 = vpop.permute.xlu0 %1214
        %v1216 = vlaneseq
        %v1217 = vshrl.u32 %v1216, 7
        %v1218 = vsub.s32 1, %v1217
        %v1219 = vrot.slane %v1139, %v1218
        %1221 = vbcast.lane.b32.xlu0 %v1219, 256
        %v1222 = vpop.permute.xlu0 %1221
        %v1223 = vlaneseq
        %v1224 = vshrl.u32 %v1223, 7
        %v1225 = vsub.s32 2, %v1224
        %v1226 = vrot.slane %v1139, %v1225
        %1228 = vbcast.lane.b32.xlu0 %v1226, 256
        %v1229 = vpop.permute.xlu0 %1228
        %v1230 = vlaneseq
        %v1231 = vshrl.u32 %v1230, 7
        %v1232 = vsub.s32 3, %v1231
        %v1233 = vrot.slane %v1139, %v1232
        %1235 = vbcast.lane.b32.xlu0 %v1233, 256
        %v1236 = vpop.permute.xlu0 %1235
        %v1237 = vlaneseq
        %v1238 = vshrl.u32 %v1237, 7
        %v1239 = vsub.s32 0, %v1238
        %v1240 = vrot.slane %v1140, %v1239
        %1242 = vbcast.lane.b32.xlu0 %v1240, 256
        %v1243 = vpop.permute.xlu0 %1242
        %v1244 = vlaneseq
        %v1245 = vshrl.u32 %v1244, 7
        %v1246 = vsub.s32 1, %v1245
        %v1247 = vrot.slane %v1140, %v1246
        %1249 = vbcast.lane.b32.xlu0 %v1247, 256
        %v1250 = vpop.permute.xlu0 %1249
        %v1251 = vlaneseq
        %v1252 = vshrl.u32 %v1251, 7
        %v1253 = vsub.s32 2, %v1252
        %v1254 = vrot.slane %v1140, %v1253
        %1256 = vbcast.lane.b32.xlu0 %v1254, 256
        %v1257 = vpop.permute.xlu0 %1256
        %v1258 = vlaneseq
        %v1259 = vshrl.u32 %v1258, 7
        %v1260 = vsub.s32 3, %v1259
        %v1261 = vrot.slane %v1140, %v1260
        %1263 = vbcast.lane.b32.xlu0 %v1261, 256
        %v1264 = vpop.permute.xlu0 %1263
        %v1265 = vlaneseq
        %v1266 = vshrl.u32 %v1265, 7
        %v1267 = vsub.s32 0, %v1266
        %v1268 = vrot.slane %v1151, %v1267
        %1270 = vbcast.lane.b32.xlu0 %v1268, 256
        %v1271 = vpop.permute.xlu0 %1270
        %v1272 = vlaneseq
        %v1273 = vshrl.u32 %v1272, 7
        %v1274 = vsub.s32 1, %v1273
        %v1275 = vrot.slane %v1151, %v1274
        %1277 = vbcast.lane.b32.xlu0 %v1275, 256
        %v1278 = vpop.permute.xlu0 %1277
        %v1279 = vlaneseq
        %v1280 = vshrl.u32 %v1279, 7
        %v1281 = vsub.s32 2, %v1280
        %v1282 = vrot.slane %v1151, %v1281
        %1284 = vbcast.lane.b32.xlu0 %v1282, 256
        %v1285 = vpop.permute.xlu0 %1284
        %v1286 = vlaneseq
        %v1287 = vshrl.u32 %v1286, 7
        %v1288 = vsub.s32 3, %v1287
        %v1289 = vrot.slane %v1151, %v1288
        %1291 = vbcast.lane.b32.xlu0 %v1289, 256
        %v1292 = vpop.permute.xlu0 %1291
        %v1293 = vlaneseq
        %v1294 = vshrl.u32 %v1293, 7
        %v1295 = vsub.s32 0, %v1294
        %v1296 = vrot.slane %v1152, %v1295
        %1298 = vbcast.lane.b32.xlu0 %v1296, 256
        %v1299 = vpop.permute.xlu0 %1298
        %v1300 = vlaneseq
        %v1301 = vshrl.u32 %v1300, 7
        %v1302 = vsub.s32 1, %v1301
        %v1303 = vrot.slane %v1152, %v1302
        %1305 = vbcast.lane.b32.xlu0 %v1303, 256
        %v1306 = vpop.permute.xlu0 %1305
        %v1307 = vlaneseq
        %v1308 = vshrl.u32 %v1307, 7
        %v1309 = vsub.s32 2, %v1308
        %v1310 = vrot.slane %v1152, %v1309
        %1312 = vbcast.lane.b32.xlu0 %v1310, 256
        %v1313 = vpop.permute.xlu0 %1312
        %v1314 = vlaneseq
        %v1315 = vshrl.u32 %v1314, 7
        %v1316 = vsub.s32 3, %v1315
        %v1317 = vrot.slane %v1152, %v1316
        %1319 = vbcast.lane.b32.xlu0 %v1317, 256
        %v1320 = vpop.permute.xlu0 %1319
        %v1337 = vrot.slane %v237, 4
        %v1338 = vrot.slane %v238, 4
        %v1339 = vrot.slane %v239, 4
        %v1340 = vrot.slane %v240, 4
        %v1341 = vrot.slane %v241, 4
        %v1342 = vrot.slane %v242, 4
        %v1343 = vrot.slane %v243, 4
        %v1344 = vrot.slane %v244, 4
        %v1345 = vrot.slane %v245, 4
        %v1346 = vrot.slane %v246, 4
        %v1347 = vrot.slane %v247, 4
        %v1348 = vrot.slane %v248, 4
        %v1349 = vrot.slane %v249, 4
        %v1350 = vrot.slane %v250, 4
        %v1351 = vrot.slane %v251, 4
        %v1352 = vrot.slane %v252, 4
        %vm1369 = vcmask 1043456
        %v1370 = vsel %vm1369, %v1337, %v1337
        %v1371 = vsel %vm1369, %v1338, %v1338
        %v1372 = vsel %vm1369, %v1339, %v1339
        %v1373 = vsel %vm1369, %v1340, %v1340
        %v1374 = vsel %vm1369, %v1341, %v1341
        %v1375 = vsel %vm1369, %v1342, %v1342
        %v1376 = vsel %vm1369, %v1343, %v1343
        %v1377 = vsel %vm1369, %v1344, %v1344
        %v1378 = vsel %vm1369, %v1345, %v1345
        %v1379 = vsel %vm1369, %v1346, %v1346
        %v1380 = vsel %vm1369, %v1347, %v1347
        %v1381 = vsel %vm1369, %v1348, %v1348
        %v1382 = vsel %vm1369, %v1349, %v1349
        %v1383 = vsel %vm1369, %v1350, %v1350
        %v1384 = vsel %vm1369, %v1351, %v1351
        %v1385 = vsel %vm1369, %v1352, %v1352
        %v1386 = vmul.f32 %v1159, %v1370
        %v1387 = vmul.f32 %v1159, %v1371
        %v1388 = vmul.f32 %v1166, %v1372
        %v1389 = vmul.f32 %v1166, %v1373
        %v1390 = vmul.f32 %v1173, %v1374
        %v1391 = vmul.f32 %v1173, %v1375
        %v1392 = vmul.f32 %v1180, %v1376
        %v1393 = vmul.f32 %v1180, %v1377
        %v1394 = vmul.f32 %v1187, %v1378
        %v1395 = vmul.f32 %v1187, %v1379
        %v1396 = vmul.f32 %v1194, %v1380
        %v1397 = vmul.f32 %v1194, %v1381
        %v1398 = vmul.f32 %v1201, %v1382
        %v1399 = vmul.f32 %v1201, %v1383
        %v1400 = vmul.f32 %v1208, %v1384
        %v1401 = vmul.f32 %v1208, %v1385
        %v1402 = vmul.f32 %v1215, %v237
        %v1403 = vmul.f32 %v1215, %v238
        %v1404 = vmul.f32 %v1222, %v239
        %v1405 = vmul.f32 %v1222, %v240
        %v1406 = vmul.f32 %v1229, %v241
        %v1407 = vmul.f32 %v1229, %v242
        %v1408 = vmul.f32 %v1236, %v243
        %v1409 = vmul.f32 %v1236, %v244
        %v1410 = vmul.f32 %v1243, %v245
        %v1411 = vmul.f32 %v1243, %v246
        %v1412 = vmul.f32 %v1250, %v247
        %v1413 = vmul.f32 %v1250, %v248
        %v1414 = vmul.f32 %v1257, %v249
        %v1415 = vmul.f32 %v1257, %v250
        %v1416 = vmul.f32 %v1264, %v251
        %v1417 = vmul.f32 %v1264, %v252
        %v1418 = vadd.f32 %v1386, %v1402
        %v1419 = vadd.f32 %v1387, %v1403
        %v1420 = vadd.f32 %v1388, %v1404
        %v1421 = vadd.f32 %v1389, %v1405
        %v1422 = vadd.f32 %v1390, %v1406
        %v1423 = vadd.f32 %v1391, %v1407
        %v1424 = vadd.f32 %v1392, %v1408
        %v1425 = vadd.f32 %v1393, %v1409
        %v1426 = vadd.f32 %v1394, %v1410
        %v1427 = vadd.f32 %v1395, %v1411
        %v1428 = vadd.f32 %v1396, %v1412
        %v1429 = vadd.f32 %v1397, %v1413
        %v1430 = vadd.f32 %v1398, %v1414
        %v1431 = vadd.f32 %v1399, %v1415
        %v1432 = vadd.f32 %v1400, %v1416
        %v1433 = vadd.f32 %v1401, %v1417
        %v1434 = vadd.f32 %v1418, %v1271
        %v1435 = vadd.f32 %v1419, %v1271
        %v1436 = vadd.f32 %v1420, %v1278
        %v1437 = vadd.f32 %v1421, %v1278
        %v1438 = vadd.f32 %v1422, %v1285
        %v1439 = vadd.f32 %v1423, %v1285
        %v1440 = vadd.f32 %v1424, %v1292
        %v1441 = vadd.f32 %v1425, %v1292
        %v1442 = vadd.f32 %v1426, %v1299
        %v1443 = vadd.f32 %v1427, %v1299
        %v1444 = vadd.f32 %v1428, %v1306
        %v1445 = vadd.f32 %v1429, %v1306
        %v1446 = vadd.f32 %v1430, %v1313
        %v1447 = vadd.f32 %v1431, %v1313
        %v1448 = vadd.f32 %v1432, %v1320
        %v1449 = vadd.f32 %v1433, %v1320
        %v1450 = vmul.f32 %v1434, 1.442695
        %v1451 = vpow.pop %v1450
        %v1452 = vmul.f32 %v1435, 1.442695
        %v1453 = vpow.pop %v1452
        %v1454 = vmul.f32 %v1436, 1.442695
        %v1455 = vpow.pop %v1454
        %v1456 = vmul.f32 %v1437, 1.442695
        %v1457 = vpow.pop %v1456
        %v1458 = vmul.f32 %v1438, 1.442695
        %v1459 = vpow.pop %v1458
        %v1460 = vmul.f32 %v1439, 1.442695
        %v1461 = vpow.pop %v1460
        %v1462 = vmul.f32 %v1440, 1.442695
        %v1463 = vpow.pop %v1462
        %v1464 = vmul.f32 %v1441, 1.442695
        %v1465 = vpow.pop %v1464
        %v1466 = vmul.f32 %v1442, 1.442695
        %v1467 = vpow.pop %v1466
        %v1468 = vmul.f32 %v1443, 1.442695
        %v1469 = vpow.pop %v1468
        %v1470 = vmul.f32 %v1444, 1.442695
        %v1471 = vpow.pop %v1470
        %v1472 = vmul.f32 %v1445, 1.442695
        %v1473 = vpow.pop %v1472
        %v1474 = vmul.f32 %v1446, 1.442695
        %v1475 = vpow.pop %v1474
        %v1476 = vmul.f32 %v1447, 1.442695
        %v1477 = vpow.pop %v1476
        %v1478 = vmul.f32 %v1448, 1.442695
        %v1479 = vpow.pop %v1478
        %v1480 = vmul.f32 %v1449, 1.442695
        %v1481 = vpow.pop %v1480
        %v1482 = vadd.f32 %v1451, 1.0
        %v1483 = vadd.f32 %v1453, 1.0
        %v1484 = vadd.f32 %v1455, 1.0
        %v1485 = vadd.f32 %v1457, 1.0
        %v1486 = vadd.f32 %v1459, 1.0
        %v1487 = vadd.f32 %v1461, 1.0
        %v1488 = vadd.f32 %v1463, 1.0
        %v1489 = vadd.f32 %v1465, 1.0
        %v1490 = vadd.f32 %v1467, 1.0
        %v1491 = vadd.f32 %v1469, 1.0
        %v1492 = vadd.f32 %v1471, 1.0
        %v1493 = vadd.f32 %v1473, 1.0
        %v1494 = vadd.f32 %v1475, 1.0
        %v1495 = vadd.f32 %v1477, 1.0
        %v1496 = vadd.f32 %v1479, 1.0
        %v1497 = vadd.f32 %v1481, 1.0
        %v1498 = vrcp.pop %v1482
        %v1499 = vrcp.pop %v1483
        %v1500 = vrcp.pop %v1484
        %v1501 = vrcp.pop %v1485
        %v1502 = vrcp.pop %v1486
        %v1503 = vrcp.pop %v1487
        %v1504 = vrcp.pop %v1488
        %v1505 = vrcp.pop %v1489
        %v1506 = vrcp.pop %v1490
        %v1507 = vrcp.pop %v1491
        %v1508 = vrcp.pop %v1492
        %v1509 = vrcp.pop %v1493
        %v1510 = vrcp.pop %v1494
        %v1511 = vrcp.pop %v1495
        %v1512 = vrcp.pop %v1496
        %v1513 = vrcp.pop %v1497
        %v1514 = vmul.f32 %v237, %v1498
        %v1515 = vmul.f32 %v238, %v1499
        %v1516 = vmul.f32 %v239, %v1500
        %v1517 = vmul.f32 %v240, %v1501
        %v1518 = vmul.f32 %v241, %v1502
        %v1519 = vmul.f32 %v242, %v1503
        %v1520 = vmul.f32 %v243, %v1504
        %v1521 = vmul.f32 %v244, %v1505
        %v1522 = vmul.f32 %v245, %v1506
        %v1523 = vmul.f32 %v246, %v1507
        %v1524 = vmul.f32 %v247, %v1508
        %v1525 = vmul.f32 %v248, %v1509
        %v1526 = vmul.f32 %v249, %v1510
        %v1527 = vmul.f32 %v250, %v1511
        %v1528 = vmul.f32 %v251, %v1512
        %v1529 = vmul.f32 %v252, %v1513
        %1530 = vst [vmem:[%s234] sm:$0xff] %v1514
        %1531 = vst [vmem:[%s234 + $0x8] sm:$0xff] %v1515
        %1532 = vst [vmem:[%s234 + $0x20] sm:$0xff] %v1516
        %1533 = vst [vmem:[%s234 + $0x28] sm:$0xff] %v1517
        %1534 = vst [vmem:[%s234 + $0x40] sm:$0xff] %v1518
        %1535 = vst [vmem:[%s234 + $0x48] sm:$0xff] %v1519
        %1536 = vst [vmem:[%s234 + $0x60] sm:$0xff] %v1520
        %1537 = vst [vmem:[%s234 + $0x68] sm:$0xff] %v1521
        %1538 = vst [vmem:[%s234 + $0x10] sm:$0xff] %v1522
        %1539 = vst [vmem:[%s234 + $0x18] sm:$0xff] %v1523
        %1540 = vst [vmem:[%s234 + $0x30] sm:$0xff] %v1524
        %1541 = vst [vmem:[%s234 + $0x38] sm:$0xff] %v1525
        %1542 = vst [vmem:[%s234 + $0x50] sm:$0xff] %v1526
        %1543 = vst [vmem:[%s234 + $0x58] sm:$0xff] %v1527
        %1544 = vst [vmem:[%s234 + $0x70] sm:$0xff] %v1528
        %1545 = vst [vmem:[%s234 + $0x78] sm:$0xff] %v1529
        %s1546 = sand.u32 %s134, 1
        %s1547 = scalar_lea.sflag [#allocation4], %s1546
        %s1548 = sand.u32 %s134, 1
        %s1549 = smul.addr %s1548, 128
        %s1550 = scalar_lea.vmem [#allocation5], %s1549
        // Predicated region
        $region41: #{tpu_custom_call.1} parent=35 // pred_check
          %p1551 = pneg %p144
        $region42: #{tpu_custom_call.1} parent=35 // pred_check_branch
          %1553 = sbr.rel (%p1551) target = $region44
        $region43: #{tpu_custom_call.1} parent=35 // pred_region
          %s1554 = smul.u32 4, %s26
          %s1556 = ssub.s32 2048, 2048
          %1557 = vsyncadd %s1547, %s1556
          %s1558 = smul.addr %s1554, 4
          %s1559 = smul.addr %s25, 16
          %s1560 = sadd.s32 %s1558, %s1559
          %s1561 = smul.addr %s1560, 128
          %s1562 = scalar_lea.hbm %s4, %s1561
          %s1563 = sshll.u32 %s1550, 4
          %s1564 = int_to_ptr.vmem [resolvable:$true] %s1563
          %1569 = dma.vmem_to_hbm [thread:$0]  %s1564, 2048, %s1562, %s1547, 512, 512, 32
        $region44: #{tpu_custom_call.1} parent=35 // pred_fallthru
          _
      $region36: #{tpu_custom_call.1} parent=5 // pred_fallthru
        _
      %p1570 = scmp.le.s32.totalorder 2, %s16
      // Predicated region
      $region45: #{tpu_custom_call.1} parent=5 // pred_check
        %p1571 = pneg %p1570
      $region46: #{tpu_custom_call.1} parent=5 // pred_check_branch
        %1573 = sbr.rel (%p1571) target = $region48
      $region47: #{tpu_custom_call.1} parent=5 // pred_region
        %s1574 = ssub.s32 %s16, 2
        // Predicated region
        $region49: #{tpu_custom_call.1} parent=47 // pred_check
          %p1575 = pneg %p150
        $region50: #{tpu_custom_call.1} parent=47 // pred_check_branch
          %1577 = sbr.rel (%p1575) target = $region52
        $region51: #{tpu_custom_call.1} parent=47 // pred_region
          %s1578 = sand.u32 %s135, 1
          %s1579 = scalar_lea.sflag [#allocation4], %s1578
          %s1580 = sand.u32 %s135, 1
          %s1581 = smul.addr %s1580, 128
          %s1582 = scalar_lea.vmem [#allocation5], %s1581
          %1583 = dma.done %s1579, 2048
        $region52: #{tpu_custom_call.1} parent=47 // pred_fallthru
          _
      $region48: #{tpu_custom_call.1} parent=5 // pred_fallthru
        _
    $region6: #{tpu_custom_call.1} parent=1 // loop_footer
      %s20 = sadd.s32 1, %s16
    $region7: #{tpu_custom_call.1} parent=1 // loop_footer_branch
      %15 = sbr.rel target = $region3
    $region8: #{tpu_custom_call.1} parent=1 // loop_exit
      _
    %1584 = vsyncpa [#allocation3], 1
    %s1585 = scalar_lea.sflag [#allocation3], 1
    %1586 = vsyncpa %s1585, 1
    %1587 = vsyncpa [#allocation4], 1
    %s1588 = scalar_lea.sflag [#allocation4], 1
    %1589 = vsyncpa %s1588, 1

</llo_original>
